<compile_context>
chip_gen: v7x
topology: tpu7x:2x2x1
jax: 0.10.0
libtpu: 0.0.40
codegen_flags: <defaults>
</compile_context>

<pallas_src>
import jax
import jax.numpy as jnp
from jax import lax
from jax.experimental import pallas as pl
from jax.experimental.pallas import tpu as pltpu


SP_PAD = 128            # spatial embedding padded to one full lane width
NEG_BIG = -1e30


# ----------------------------------------------------------------------------
# small jnp helpers used inside the kernels
# ----------------------------------------------------------------------------
def _layer_norm(y, gamma, beta, eps=1e-5):
    mu = jnp.mean(y, axis=-1, keepdims=True)
    var = jnp.mean((y - mu) ** 2, axis=-1, keepdims=True)
    return (y - mu) * lax.rsqrt(var + eps) * gamma + beta


def _activate(y, act):
    if act == "relu":
        return jnp.maximum(y, 0.0)
    if act == "tanh":
        return jnp.tanh(y)
    return y


def _apply_layers(x, metas, wb, vb):
    """Generic MLP tail on packed blobs (bf16 MXU operands, f32 accumulation)."""
    f32, bf16 = jnp.float32, jnp.bfloat16
    for m in metas:
        w = wb[m["woff"]:m["woff"] + m["din"], :m["dout"]]
        y = jnp.dot(x.astype(bf16), w, preferred_element_type=f32)
        y = y + vb[m["voff"]:m["voff"] + 1, :m["dout"]]
        if m["ln"]:
            y = _layer_norm(y, vb[m["voff"] + 1:m["voff"] + 2, :m["dout"]],
                            vb[m["voff"] + 2:m["voff"] + 3, :m["dout"]])
        x = _activate(y, m["act"])
    return x


# ----------------------------------------------------------------------------
# pass 1: spatial MLP kernel (row-parallel)
# ----------------------------------------------------------------------------
def _make_spatial_kernel(sp_meta, *, norm):
    f32 = jnp.float32

    def kernel(h_ref, wb_ref, vb_ref, sp_ref):
        h = h_ref[...]                                       # [tm, F] f32
        hm = jnp.mean(h, axis=-1, keepdims=True)             # [tm, 1]
        x = jnp.concatenate([h, hm], axis=-1)                # [tm, F+1]

        wb = wb_ref[...]
        vb = vb_ref[...]
        sp = _apply_layers(x, sp_meta, wb, vb)               # [tm, emb]

        if norm:                                             # F.normalize(sp, dim=-1)
            ssq = jnp.sum(sp * sp, axis=-1, keepdims=True)
            sp = sp * lax.rsqrt(jnp.maximum(ssq, 1e-24))

        tm = sp.shape[0]
        pad = SP_PAD - sp.shape[1]
        if pad > 0:                                          # lane-dense [tm, 128] store
            sp = jnp.concatenate([sp, jnp.zeros((tm, pad), f32)], axis=-1)
        sp_ref[...] = sp

    return kernel


# ----------------------------------------------------------------------------
# pass 2: radius graph + gravitational pooling + feature MLP
#   grid = (N/tm, N/tn), i "parallel", j "arbitrary" (reduction, last axis)
# ----------------------------------------------------------------------------
def _make_pool_kernel(ft0_meta, ft_rest_meta, *, r2, grav_w, norm, self_loop,
                      tm, tn, fa):
    f32, bf16 = jnp.float32, jnp.bfloat16

    def kernel(sp_i_ref, spT_j_ref, h_i_ref, h_j_ref, wb_ref, vb_ref,
               out_ref, adj_ref, sum_acc, max_acc, deg_acc):
        i = pl.program_id(0)
        j = pl.program_id(1)
        nj = pl.num_programs(1)

        @pl.when(j == 0)
        def _():
            sum_acc[...] = jnp.zeros_like(sum_acc)
            max_acc[...] = jnp.full_like(max_acc, NEG_BIG)
            deg_acc[...] = jnp.zeros_like(deg_acc)

        sp_i = sp_i_ref[...]                                 # [tm, 128] f32
        spT_j = spT_j_ref[...]                               # [128, tn] f32
        h_j = h_j_ref[...]                                   # [tn, F]  f32
        hm_j = jnp.mean(h_j, axis=-1, keepdims=True)
        haug_j = jnp.concatenate([h_j, hm_j], axis=-1)       # [tn, F+1]

        # squared pairwise distances (kept f32: feeds a hard radius threshold)
        gram = jnp.dot(sp_i, spT_j, preferred_element_type=f32)   # [tm, tn]
        if norm:
            d = jnp.maximum(2.0 - 2.0 * gram, 0.0)
        else:
            ssq_i = jnp.sum(sp_i * sp_i, axis=-1, keepdims=True)
            ssq_j = jnp.sum(spT_j * spT_j, axis=0, keepdims=True)
            d = jnp.maximum(ssq_i + ssq_j - 2.0 * gram, 0.0)

        row_g = i * tm + lax.broadcasted_iota(jnp.int32, (tm, tn), 0)
        col_g = j * tn + lax.broadcasted_iota(jnp.int32, (tm, tn), 1)
        diag = row_g == col_g
        if self_loop:
            d = jnp.where(diag, 0.0, d)                      # exact zero self distance
            mask = d <= r2
        else:
            mask = (d <= r2) & jnp.logical_not(diag)

        w_att = jnp.where(mask, jnp.exp((-grav_w / r2) * d), 0.0)  # [tm, tn] f32
        adj_ref[...] = mask.astype(jnp.int8)

        deg_new = deg_acc[...] + jnp.sum(mask.astype(f32), axis=-1, keepdims=True)

        # scatter_add / scatter_mean numerator: one MXU matmul (bf16 in, f32 acc).
        sum_new = sum_acc[...] + jnp.dot(
            w_att.astype(bf16), haug_j.astype(bf16), preferred_element_type=f32)

        # scatter_max: per-SOURCE-node running max over a [tm, F+1] accumulator.
        # Pure VPU broadcast-mul / select / max; w_att == 0  <=>  edge masked out.
        m_run = max_acc[...]
        for c in range(tn):                                  # static unroll, tn <= 128
            colw = w_att[:, c:c + 1]                         # [tm, 1]
            cand = colw * haug_j[c:c + 1, :]                 # [tm, F+1]
            cand = jnp.where(colw > 0.0, cand, NEG_BIG)
            m_run = jnp.maximum(m_run, cand)

        sum_acc[...] = sum_new
        max_acc[...] = m_run
        deg_acc[...] = deg_new

        @pl.when(j == nj - 1)
        def _():
            inv_deg = 1.0 / jnp.maximum(deg_new, 1.0)
            mean_h = sum_new * inv_deg
            max_h = jnp.where(deg_new > 0.0, m_run, 0.0)     # guard isolated nodes

            h_i = h_i_ref[...]
            hm_i = jnp.mean(h_i, axis=-1, keepdims=True)
            haug_i = jnp.concatenate([h_i, hm_i], axis=-1)   # [tm, F+1]

            wb = wb_ref[...]
            vb = vb_ref[...]

            # feature layer 0 over [sum | mean | max | h_aug] via split weights
            d0 = ft0_meta["dout"]
            v0 = ft0_meta["voff"]
            y = None
            for blk, woff in zip((sum_new, mean_h, max_h, haug_i),
                                 ft0_meta["woffs"]):
                w = wb[woff:woff + fa, :d0]
                t = jnp.dot(blk.astype(bf16), w, preferred_element_type=f32)
                y = t if y is None else y + t
            y = y + vb[v0:v0 + 1, :d0]
            if ft0_meta["ln"]:
                y = _layer_norm(y, vb[v0 + 1:v0 + 2, :d0], vb[v0 + 2:v0 + 3, :d0])
            x = _activate(y, ft0_meta["act"])

            x = _apply_layers(x, ft_rest_meta, wb, vb)
            out_ref[...] = x.astype(out_ref.dtype)

    return kernel


# ----------------------------------------------------------------------------
# parameter construction (PyTorch-style init, (in, out) weight layout)
# ----------------------------------------------------------------------------
HPARAMS = {
    "feature_hidden": 32,
    "nb_layer": 2,
    "emb_dim": 8,
    "activation": "ReLU",
    "feature_activation": "Tanh",
    "layernorm": True,
    "batchnorm": False,
    "r": 1.0,
    "knn": 0,
    "rand_k": 0,
    "max_knn": 100,
    "self_loop": True,
    "grav_weight": 1.0,
    "max_epochs": 10,
    "norm": True,
}


def _init_linear(key, f_in, f_out):
    kw, kb = jax.random.split(key)
    bound = 1.0 / (f_in ** 0.5)
    w = jax.random.uniform(kw, (f_in, f_out), jnp.float32, -bound, bound)
    b = jax.random.uniform(kb, (f_out,), jnp.float32, -bound, bound)
    return w, b


def _make_mlp_params(key, input_size, sizes, hidden_act, output_act, layer_norm):
    dims = [input_size] + list(sizes)
    layers = []
    keys = jax.random.split(key, len(sizes))
    for i in range(len(sizes)):
        w, b = _init_linear(keys[i], dims[i], dims[i + 1])
        is_last = i == len(sizes) - 1
        if is_last:
            use_ln = layer_norm and (output_act is not None)
            act = output_act
        else:
            use_ln = layer_norm
            act = hidden_act
        layers.append({
            "w": w, "b": b,
            "gamma": jnp.ones((dims[i + 1],), jnp.float32),
            "beta": jnp.zeros((dims[i + 1],), jnp.float32),
            "ln": use_ln, "act": act,
        })
    return layers


def init_gravconv_params(key, hparams):
    in_size = hparams["feature_hidden"]
    out_size = hparams["feature_hidden"]
    k_sp, k_ft = jax.random.split(key)
    spatial = _make_mlp_params(
        k_sp, in_size + 1,
        [in_size] * hparams["nb_layer"] + [hparams["emb_dim"]],
        hidden_act="relu", output_act=None, layer_norm=hparams["layernorm"])
    feature = _make_mlp_params(
        k_ft, 4 * (in_size + 1),
        [out_size] * hparams["nb_layer"],
        hidden_act="relu", output_act="tanh", layer_norm=hparams["layernorm"])
    return {"spatial": spatial, "feature": feature}


# ----------------------------------------------------------------------------
# packing: one bf16 weight blob + one f32 vector blob (+ static slice metadata)
# ----------------------------------------------------------------------------
def _round_up(x, m):
    return (x + m - 1) // m * m


def _pack_params(params):
    all_layers = params["spatial"] + params["feature"]
    cw = max(int(l["w"].shape[1]) for l in all_layers)        # blob lane width

    w_blocks, v_rows = [], []
    row = 0

    def add_w(w):
        nonlocal row
        off = row
        w_blocks.append((off, w))
        row = _round_up(off + int(w.shape[0]), 16)            # bf16 sublane-pack aligned
        return off

    def add_v(layer):
        off = len(v_rows)
        v_rows.append(layer["b"])
        if layer["ln"]:
            v_rows.append(layer["gamma"])
            v_rows.append(layer["beta"])
        return off

    sp_meta = []
    for l in params["spatial"]:
        woff = add_w(l["w"])
        voff = add_v(l)
        sp_meta.append(dict(woff=woff, din=int(l["w"].shape[0]),
                            dout=int(l["w"].shape[1]), voff=voff,
                            ln=bool(l["ln"]), act=l["act"]))

    ft = params["feature"]
    l0 = ft[0]
    fa = int(l0["w"].shape[0]) // 4                           # F + 1
    woffs0 = [add_w(l0["w"][b * fa:(b + 1) * fa]) for b in range(4)]
    voff0 = add_v(l0)
    ft0_meta = dict(woffs=woffs0, din=fa, dout=int(l0["w"].shape[1]),
                    voff=voff0, ln=bool(l0["ln"]), act=l0["act"])

    ft_rest_meta = []
    for l in ft[1:]:
        woff = add_w(l["w"])
        voff = add_v(l)
        ft_rest_meta.append(dict(woff=woff, din=int(l["w"].shape[0]),
                                 dout=int(l["w"].shape[1]), voff=voff,
                                 ln=bool(l["ln"]), act=l["act"]))

    wblob = jnp.zeros((max(row, 16), cw), jnp.float32)
    for off, w in w_blocks:
        wblob = wblob.at[off:off + w.shape[0], :w.shape[1]].set(w)
    wblob = wblob.astype(jnp.bfloat16)

    vblob = jnp.zeros((len(v_rows), cw), jnp.float32)
    for r, v in enumerate(v_rows):
        vblob = vblob.at[r, :v.shape[0]].set(v)

    return wblob, vblob, sp_meta, ft0_meta, ft_rest_meta, fa


def _sched(val, epoch, warmup):
    """r / grav_weight epoch schedules from the PyTorch properties."""
    if isinstance(val, (list, tuple)):
        if len(val) == 2:
            return val[0] + (val[1] - val[0]) * epoch / warmup
        if len(val) == 3:
            half = warmup / 2
            if epoch < half:
                return val[0] + (val[1] - val[0]) * epoch / half
            return val[1] + (val[2] - val[1]) * (epoch - half) / half
    return float(val)


def _pick_tiles(n):
    # i-tile: largest divisor <= 256 (v7x VMEM friendly; review: 256-512 on v6e)
    # j-tile: multiple of 128 (int8 adjacency lane tiling + bounded max-loop unroll)
    def best(cap, gran):
        if n <= cap:
            return n
        for c in range(cap, gran - 1, -gran):
            if n % c == 0:
                return c
        return n
    return best(256, 32), best(128, 128)


# ----------------------------------------------------------------------------
# GravConv forward — two pipelined pallas_calls
# ----------------------------------------------------------------------------
def gravconv_forward(params, hidden_features, batch, current_epoch, hparams,
                     *, tm=None, tn=None):
    del batch  # only used by the knn / learned-grav-weight paths (not implemented)
    n, feat = hidden_features.shape
    warmup = float(hparams.get("grav_warmup", hparams["max_epochs"]))
    r = float(_sched(hparams["r"], current_epoch, warmup)) if hparams.get("r") else 0.3
    r2 = r * r
    grav_w = float(_sched(hparams.get("grav_weight", 1.0), current_epoch, warmup))
    norm = bool(hparams.get("norm", False))
    self_loop = bool(hparams.get("self_loop", True))
    emb = int(hparams["emb_dim"])
    f_out = int(params["feature"][-1]["w"].shape[1])

    wblob, vblob, sp_meta, ft0_meta, ft_rest_meta, fa = _pack_params(params)
    assert fa == feat + 1

    tm_d, tn_d = _pick_tiles(n)
    tm = tm_d if tm is None else tm
    tn = tn_d if tn is None else tn
    assert n % tm == 0 and n % tn == 0, "N must be divisible by the tile sizes"
    num_i, num_j = n // tm, n // tn

    # Explicit (conservative) scoped-VMEM budget; actual live set is ~1-2 MiB at
    # these tile sizes. Raise toward ~100 MiB on v5e/v6e (keep <=48 MiB on v7x)
    # when using much larger tiles.
    vmem_budget = 32 * 1024 * 1024

    # ---------------- pass 1: spatial MLP ----------------
    mlp1_flops = 2 * n * sum(m["din"] * m["dout"] for m in sp_meta)
    ce1 = pl.CostEstimate(
        flops=int(mlp1_flops),
        transcendentals=int(n),
        bytes_accessed=int(n * feat * 4 + n * SP_PAD * 4
                           + wblob.size * 2 + vblob.size * 4))

    sp_pad = pl.pallas_call(
        _make_spatial_kernel(sp_meta, norm=norm),
        out_shape=jax.ShapeDtypeStruct((n, SP_PAD), jnp.float32),
        grid=(num_i,),
        in_specs=[pl.BlockSpec((tm, feat), lambda i: (i, 0)),
                  pl.BlockSpec(wblob.shape, lambda i: (0, 0)),
                  pl.BlockSpec(vblob.shape, lambda i: (0, 0))],
        out_specs=pl.BlockSpec((tm, SP_PAD), lambda i: (i, 0)),
        compiler_params=pltpu.CompilerParams(
            dimension_semantics=("parallel",),
            vmem_limit_bytes=vmem_budget),
        cost_estimate=ce1,
    )(hidden_features, wblob, vblob)

    spT = jnp.transpose(sp_pad)                          # [128, N] (tiny XLA op)

    # ---------------- pass 2: pooling + feature MLP ----------------
    agg_flops = 2 * n * n * (SP_PAD + fa) + 4 * n * n * fa
    mlp2_flops = 2 * n * (4 * fa * ft0_meta["dout"]
                          + sum(m["din"] * m["dout"] for m in ft_rest_meta))
    ce2 = pl.CostEstimate(
        flops=int(agg_flops + mlp2_flops),
        transcendentals=int(n * n),
        bytes_accessed=int(n * n                              # int8 adjacency
                           + num_i * n * (SP_PAD + feat) * 4  # j-streamed reads
                           + n * (SP_PAD + feat) * 4
                           + n * f_out * 4))

    pool_kernel = _make_pool_kernel(
        ft0_meta, ft_rest_meta, r2=r2, grav_w=grav_w, norm=norm,
        self_loop=self_loop, tm=tm, tn=tn, fa=fa)

    out, adj = pl.pallas_call(
        pool_kernel,
        out_shape=(jax.ShapeDtypeStruct((n, f_out), jnp.float32),
                   jax.ShapeDtypeStruct((n, n), jnp.int8)),
        grid=(num_i, num_j),
        in_specs=[pl.BlockSpec((tm, SP_PAD), lambda i, j: (i, 0)),
                  pl.BlockSpec((SP_PAD, tn), lambda i, j: (0, j)),
                  pl.BlockSpec((tm, feat), lambda i, j: (i, 0)),
                  pl.BlockSpec((tn, feat), lambda i, j: (j, 0)),
                  pl.BlockSpec(wblob.shape, lambda i, j: (0, 0)),
                  pl.BlockSpec(vblob.shape, lambda i, j: (0, 0))],
        out_specs=(pl.BlockSpec((tm, f_out), lambda i, j: (i, 0)),
                   pl.BlockSpec((tm, tn), lambda i, j: (i, j))),
        scratch_shapes=[pltpu.VMEM((tm, fa), jnp.float32),    # running sum
                        pltpu.VMEM((tm, fa), jnp.float32),    # running max
                        pltpu.VMEM((tm, 1), jnp.float32)],    # degree
        compiler_params=pltpu.CompilerParams(
            dimension_semantics=("parallel", "arbitrary"),
            vmem_limit_bytes=vmem_budget),
        cost_estimate=ce2,
    )(sp_pad, spT, hidden_features, hidden_features, wblob, vblob)

    sp = sp_pad[:, :emb]
    return out, adj, sp, grav_w


if __name__ == "__main__":
    key = jax.random.PRNGKey(0)
    k_par, k_x = jax.random.split(key)

    N = 256
    F = HPARAMS["feature_hidden"]                                   # 32
    hidden_features = jax.random.normal(k_x, (N, F), jnp.float32) * 0.5
    batch = jnp.zeros((N,), jnp.int32)

    params = init_gravconv_params(k_par, HPARAMS)
    # tm=tn=128 -> grid (2, 2): exercises the parallel i axis and the j reduction
    out, adj, sp, grav_fact = gravconv_forward(
        params, hidden_features, batch, current_epoch=0, hparams=HPARAMS,
        tm=128, tn=128)

    jax.block_until_ready(out)
    jax.block_until_ready(adj)
    jax.block_until_ready(sp)

    assert out.shape == (N, F) and out.dtype == jnp.float32
    assert adj.shape == (N, N) and adj.dtype == jnp.int8
    assert sp.shape == (N, HPARAMS["emb_dim"])
    assert bool(jnp.all(jnp.isfinite(out)))
    assert bool(jnp.all(jnp.diagonal(adj) == 1))        # self loops present
    print("KERNEL_OK")
</pallas_src>

<mosaic_0001>
module attributes {stable_mosaic.version = 11 : i64} {
  func.func @kernel(%arg0: i32, %arg1: memref<128x32xf32, #tpu.memory_space<vmem>>, %arg2: memref<336x32xbf16, #tpu.memory_space<vmem>>, %arg3: memref<13x32xf32, #tpu.memory_space<vmem>>, %arg4: memref<128x128xf32, #tpu.memory_space<vmem>>) attributes {dimension_semantics = [#tpu.dimension_semantics<parallel>], iteration_bounds = array<i64: 2>, scalar_prefetch = 0 : i64, scratch_operands = 0 : i64, tpu.core_type = #tpu.core_type<tc>, window_params = [{transform_indices = @transform_0, window_bounds = array<i64: 128, 32>}, {pipeline_mode = #tpu.pipeline_mode<synchronous>, transform_indices = @transform_1, window_bounds = array<i64: 336, 32>}, {pipeline_mode = #tpu.pipeline_mode<synchronous>, transform_indices = @transform_2, window_bounds = array<i64: 13, 32>}, {transform_indices = @transform_3, window_bounds = array<i64: 128, 128>}]} {
    %c0 = arith.constant 0 : index
    %c0_0 = arith.constant 0 : index
    %0 = vector.load %arg1[%c0, %c0_0] : memref<128x32xf32, #tpu.memory_space<vmem>>, vector<128x32xf32>
    %cst = arith.constant dense<0.000000e+00> : vector<128xf32>
    %1 = vector.multi_reduction <add>, %0, %cst [1] : vector<128x32xf32> to vector<128xf32>
    %2 = vector.shape_cast %1 : vector<128xf32> to vector<128x1xf32>
    %cst_1 = arith.constant 3.200000e+01 : f32
    %3 = vector.broadcast %cst_1 : f32 to vector<128x1xf32>
    %4 = arith.divf %2, %3 : vector<128x1xf32>
    %5 = tpu.concatenate %0, %4 in 1 : vector<128x32xf32>, vector<128x1xf32> -> vector<128x33xf32>
    %c0_2 = arith.constant 0 : index
    %c0_3 = arith.constant 0 : index
    %6 = vector.load %arg2[%c0_2, %c0_3] : memref<336x32xbf16, #tpu.memory_space<vmem>>, vector<336x32xbf16>
    %c0_4 = arith.constant 0 : index
    %c0_5 = arith.constant 0 : index
    %7 = vector.load %arg3[%c0_4, %c0_5] : memref<13x32xf32, #tpu.memory_space<vmem>>, vector<13x32xf32>
    %8 = vector.extract_strided_slice %6 {offsets = [0, 0], sizes = [33, 32], strides = [1, 1]} : vector<336x32xbf16> to vector<33x32xbf16>
    %9 = arith.truncf %5 : vector<128x33xf32> to vector<128x33xbf16>
    %cst_6 = arith.constant dense<0.000000e+00> : vector<128x32xf32>
    %10 = tpu.matmul %9, %8, %cst_6 {dimension_numbers = #tpu.dot_dimension_numbers<[1], [0], [0], [1], [0, 0, 1, 1], [], []>} : vector<128x33xbf16>, vector<33x32xbf16>, vector<128x32xf32> -> vector<128x32xf32>
    %11 = vector.extract_strided_slice %7 {offsets = [0, 0], sizes = [1, 32], strides = [1, 1]} : vector<13x32xf32> to vector<1x32xf32>
    %12 = vector.broadcast %11 : vector<1x32xf32> to vector<128x32xf32>
    %13 = arith.addf %10, %12 : vector<128x32xf32>
    %14 = vector.extract_strided_slice %7 {offsets = [1, 0], sizes = [1, 32], strides = [1, 1]} : vector<13x32xf32> to vector<1x32xf32>
    %15 = vector.extract_strided_slice %7 {offsets = [2, 0], sizes = [1, 32], strides = [1, 1]} : vector<13x32xf32> to vector<1x32xf32>
    %cst_7 = arith.constant dense<0.000000e+00> : vector<128xf32>
    %16 = vector.multi_reduction <add>, %13, %cst_7 [1] : vector<128x32xf32> to vector<128xf32>
    %17 = vector.shape_cast %16 : vector<128xf32> to vector<128x1xf32>
    %cst_8 = arith.constant 3.200000e+01 : f32
    %18 = vector.broadcast %cst_8 : f32 to vector<128x1xf32>
    %19 = arith.divf %17, %18 : vector<128x1xf32>
    %20 = vector.broadcast %19 : vector<128x1xf32> to vector<128x32xf32>
    %21 = arith.subf %13, %20 : vector<128x32xf32>
    %22 = arith.mulf %21, %21 : vector<128x32xf32>
    %cst_9 = arith.constant dense<0.000000e+00> : vector<128xf32>
    %23 = vector.multi_reduction <add>, %22, %cst_9 [1] : vector<128x32xf32> to vector<128xf32>
    %24 = vector.shape_cast %23 : vector<128xf32> to vector<128x1xf32>
    %cst_10 = arith.constant 3.200000e+01 : f32
    %25 = vector.broadcast %cst_10 : f32 to vector<128x1xf32>
    %26 = arith.divf %24, %25 : vector<128x1xf32>
    %27 = vector.broadcast %19 : vector<128x1xf32> to vector<128x32xf32>
    %28 = arith.subf %13, %27 : vector<128x32xf32>
    %cst_11 = arith.constant 9.99999974E-6 : f32
    %29 = vector.broadcast %cst_11 : f32 to vector<128x1xf32>
    %30 = arith.addf %26, %29 : vector<128x1xf32>
    %31 = math.rsqrt %30 : vector<128x1xf32>
    %32 = vector.broadcast %31 : vector<128x1xf32> to vector<128x32xf32>
    %33 = arith.mulf %28, %32 : vector<128x32xf32>
    %34 = vector.broadcast %14 : vector<1x32xf32> to vector<128x32xf32>
    %35 = arith.mulf %33, %34 : vector<128x32xf32>
    %36 = vector.broadcast %15 : vector<1x32xf32> to vector<128x32xf32>
    %37 = arith.addf %35, %36 : vector<128x32xf32>
    %cst_12 = arith.constant 0.000000e+00 : f32
    %38 = vector.broadcast %cst_12 : f32 to vector<128x32xf32>
    %39 = arith.maximumf %37, %38 : vector<128x32xf32>
    %40 = vector.extract_strided_slice %6 {offsets = [48, 0], sizes = [32, 32], strides = [1, 1]} : vector<336x32xbf16> to vector<32x32xbf16>
    %41 = arith.truncf %39 : vector<128x32xf32> to vector<128x32xbf16>
    %cst_13 = arith.constant dense<0.000000e+00> : vector<128x32xf32>
    %42 = tpu.matmul %41, %40, %cst_13 {dimension_numbers = #tpu.dot_dimension_numbers<[1], [0], [0], [1], [0, 0, 1, 1], [], []>} : vector<128x32xbf16>, vector<32x32xbf16>, vector<128x32xf32> -> vector<128x32xf32>
    %43 = vector.extract_strided_slice %7 {offsets = [3, 0], sizes = [1, 32], strides = [1, 1]} : vector<13x32xf32> to vector<1x32xf32>
    %44 = vector.broadcast %43 : vector<1x32xf32> to vector<128x32xf32>
    %45 = arith.addf %42, %44 : vector<128x32xf32>
    %46 = vector.extract_strided_slice %7 {offsets = [4, 0], sizes = [1, 32], strides = [1, 1]} : vector<13x32xf32> to vector<1x32xf32>
    %47 = vector.extract_strided_slice %7 {offsets = [5, 0], sizes = [1, 32], strides = [1, 1]} : vector<13x32xf32> to vector<1x32xf32>
    %cst_14 = arith.constant dense<0.000000e+00> : vector<128xf32>
    %48 = vector.multi_reduction <add>, %45, %cst_14 [1] : vector<128x32xf32> to vector<128xf32>
    %49 = vector.shape_cast %48 : vector<128xf32> to vector<128x1xf32>
    %cst_15 = arith.constant 3.200000e+01 : f32
    %50 = vector.broadcast %cst_15 : f32 to vector<128x1xf32>
    %51 = arith.divf %49, %50 : vector<128x1xf32>
    %52 = vector.broadcast %51 : vector<128x1xf32> to vector<128x32xf32>
    %53 = arith.subf %45, %52 : vector<128x32xf32>
    %54 = arith.mulf %53, %53 : vector<128x32xf32>
    %cst_16 = arith.constant dense<0.000000e+00> : vector<128xf32>
    %55 = vector.multi_reduction <add>, %54, %cst_16 [1] : vector<128x32xf32> to vector<128xf32>
    %56 = vector.shape_cast %55 : vector<128xf32> to vector<128x1xf32>
    %cst_17 = arith.constant 3.200000e+01 : f32
    %57 = vector.broadcast %cst_17 : f32 to vector<128x1xf32>
    %58 = arith.divf %56, %57 : vector<128x1xf32>
    %59 = vector.broadcast %51 : vector<128x1xf32> to vector<128x32xf32>
    %60 = arith.subf %45, %59 : vector<128x32xf32>
    %cst_18 = arith.constant 9.99999974E-6 : f32
    %61 = vector.broadcast %cst_18 : f32 to vector<128x1xf32>
    %62 = arith.addf %58, %61 : vector<128x1xf32>
    %63 = math.rsqrt %62 : vector<128x1xf32>
    %64 = vector.broadcast %63 : vector<128x1xf32> to vector<128x32xf32>
    %65 = arith.mulf %60, %64 : vector<128x32xf32>
    %66 = vector.broadcast %46 : vector<1x32xf32> to vector<128x32xf32>
    %67 = arith.mulf %65, %66 : vector<128x32xf32>
    %68 = vector.broadcast %47 : vector<1x32xf32> to vector<128x32xf32>
    %69 = arith.addf %67, %68 : vector<128x32xf32>
    %cst_19 = arith.constant 0.000000e+00 : f32
    %70 = vector.broadcast %cst_19 : f32 to vector<128x32xf32>
    %71 = arith.maximumf %69, %70 : vector<128x32xf32>
    %72 = vector.extract_strided_slice %6 {offsets = [80, 0], sizes = [32, 8], strides = [1, 1]} : vector<336x32xbf16> to vector<32x8xbf16>
    %73 = arith.truncf %71 : vector<128x32xf32> to vector<128x32xbf16>
    %cst_20 = arith.constant dense<0.000000e+00> : vector<128x8xf32>
    %74 = tpu.matmul %73, %72, %cst_20 {dimension_numbers = #tpu.dot_dimension_numbers<[1], [0], [0], [1], [0, 0, 1, 1], [], []>} : vector<128x32xbf16>, vector<32x8xbf16>, vector<128x8xf32> -> vector<128x8xf32>
    %75 = vector.extract_strided_slice %7 {offsets = [6, 0], sizes = [1, 8], strides = [1, 1]} : vector<13x32xf32> to vector<1x8xf32>
    %76 = vector.broadcast %75 : vector<1x8xf32> to vector<128x8xf32>
    %77 = arith.addf %74, %76 : vector<128x8xf32>
    %78 = arith.mulf %77, %77 : vector<128x8xf32>
    %cst_21 = arith.constant dense<0.000000e+00> : vector<128xf32>
    %79 = vector.multi_reduction <add>, %78, %cst_21 [1] : vector<128x8xf32> to vector<128xf32>
    %80 = vector.shape_cast %79 : vector<128xf32> to vector<128x1xf32>
    %cst_22 = arith.constant 1.000000e-24 : f32
    %81 = vector.broadcast %cst_22 : f32 to vector<128x1xf32>
    %82 = arith.maximumf %80, %81 : vector<128x1xf32>
    %83 = math.rsqrt %82 : vector<128x1xf32>
    %84 = vector.broadcast %83 : vector<128x1xf32> to vector<128x8xf32>
    %85 = arith.mulf %77, %84 : vector<128x8xf32>
    %cst_23 = arith.constant 0.000000e+00 : f32
    %86 = vector.broadcast %cst_23 : f32 to vector<128x120xf32>
    %87 = tpu.concatenate %85, %86 in 1 : vector<128x8xf32>, vector<128x120xf32> -> vector<128x128xf32>
    %c0_24 = arith.constant 0 : index
    %c0_25 = arith.constant 0 : index
    %88 = vector.load %arg4[%c0_24, %c0_25] : memref<128x128xf32, #tpu.memory_space<vmem>>, vector<128x128xf32>
    tpu.vector_store %arg4[%c0_24, %c0_25], %87 {strides = array<i32>} : memref<128x128xf32, #tpu.memory_space<vmem>>, vector<128x128xf32>,
    return
  }
  func.func @transform_0(%arg0: i32) -> (i32, i32) {
    %c0_i32 = arith.constant 0 : i32
    %c0_i32_0 = arith.constant 0 : i32
    return %arg0, %c0_i32 : i32, i32
  }
  func.func @transform_1(%arg0: i32) -> (i32, i32) {
    %c0_i32 = arith.constant 0 : i32
    %c0_i32_0 = arith.constant 0 : i32
    %c0_i32_1 = arith.constant 0 : i32
    return %c0_i32, %c0_i32_0 : i32, i32
  }
  func.func @transform_2(%arg0: i32) -> (i32, i32) {
    %c0_i32 = arith.constant 0 : i32
    %c0_i32_0 = arith.constant 0 : i32
    %c0_i32_1 = arith.constant 0 : i32
    return %c0_i32, %c0_i32_0 : i32, i32
  }
  func.func @transform_3(%arg0: i32) -> (i32, i32) {
    %c0_i32 = arith.constant 0 : i32
    %c0_i32_0 = arith.constant 0 : i32
    return %arg0, %c0_i32 : i32, i32
  }
}

</mosaic_0001>

<llo_original>
// kernel: tpu_custom_call.1
$region0: #{tpu_custom_call.1}
  #allocation0 [shape = 'u32[]', space=smem, size = 0x4, offset = 0x4, fixed_abs, tag = 'smem constant byte address 0x4 - core index']
  #allocation1 [shape = 'u32[144,128]{1,0:T(1,128)}', space=vmem, size = 0x12000, scoped, tag = 'internal scratch']
  %s0 = inlined_call_operand.vmem [shape: f32[256,32], index: 0, kind: input, shape index: {}]
  %s1 = inlined_call_operand.vmem [shape: bf16[336,32], index: 1, kind: input, shape index: {}]
  %s2 = inlined_call_operand.vmem [shape: f32[13,32], index: 2, kind: input, shape index: {}]
  %s3 = inlined_call_operand.hbm [shape: f32[256,128], index: 3, kind: output, shape index: {}]
  %s4 = sld [smem:[#allocation0]]
  $region45: #{tpu_custom_call.1} parent=0
    _
  %s6 = ssub.s32 1, %s4
  %s7 = scalar_select 0, %s6, %s4
  $region1: #{tpu_custom_call.1} parent=0
    #allocation2 [shape = 'u8[131072]{0}', space=vmem, size = 0x20000, scoped, tag = 'output window, operand 0']
    #allocation3 [shape = 's32[2]{0}', space=sflag, size = 0x8, scoped, tag = 'scoped memory for tpu_custom_call.1']
    %8 = vsyncpa [#allocation3], 0
    %s9 = scalar_lea.sflag [#allocation3], 1
    %10 = vsyncpa %s9, 0
    loop: start=0, step=1, limit=4
    $region2: #{tpu_custom_call.1} parent=1 // loop_pre_header
      _
    $region3: #{tpu_custom_call.1} parent=1 // loop_header
      %s12 = sphi 0, %s16
      %p13 = scmp.ge.s32.totalorder %s12, 4
      %s22 = sphi 0, %s24
      %s25 = sphi 0, %s22
      %s26 = sphi 0, %s25
      %s42 = sphi 0, %s26
      %s46 = sphi 0, %s46
      %s48 = sphi 0, %s46
      %s49 = sphi 0, %s48
      %s63 = sphi 0, %s49
      %s67 = sphi 0, %s67
      %s69 = sphi 0, %s67
      %s70 = sphi 0, %s69
      %s84 = sphi 0, %s70
      %s90 = sphi 0, %s92
      %s93 = sphi 0, %s90
      %s94 = sphi 0, %s93
      %s110 = sphi 0, %s94
    $region4: #{tpu_custom_call.1} parent=1 // loop_header_branch
      %15 = sbr.rel (%p13) target = $region8
    $region5: #{tpu_custom_call.1} parent=1 // loop_body
      %s17 = ssub.s32 %s12, 1
      %s18 = ssub.s32 %s12, 2
      %s19 = sadd.s32 %s12, 1
      %s20 = ssub.s32 %s12, %s19
      %p21 = scmp.eq.s32.totalorder %s20, 0
      %s23 = sadd.s32 %s22, 1
      %s24 = scalar_select %p21, %s22, %s23
      %p27 = pneg %p21
      %p28 = scmp.eq.s32.totalorder %s12, 1
      %p29 = por %p27, %p28
      %p30 = scmp.ne.s32.totalorder %s22, %s25
      %p31 = scmp.eq.s32.totalorder %s12, 0
      %p32 = por %p30, %p31
      %p33 = scmp.ne.s32.totalorder %s22, %s25
      %p34 = scmp.eq.s32.totalorder %s17, 1
      %p35 = por %p33, %p34
      %p36 = scmp.ne.s32.totalorder %s25, %s26
      %p37 = scmp.eq.s32.totalorder %s17, 0
      %p38 = por %p36, %p37
      %p39 = scmp.ne.s32.totalorder %s25, %s26
      %p40 = scmp.eq.s32.totalorder %s18, 1
      %p41 = por %p39, %p40
      %p43 = scmp.ne.s32.totalorder %s26, %s42
      %p44 = scmp.eq.s32.totalorder %s18, 0
      %p45 = por %p43, %p44
      %s47 = sadd.s32 %s46, 1
      %p50 = scmp.eq.s32.totalorder %s12, 1
      %p51 = scmp.ne.s32.totalorder %s46, %s48
      %p52 = scmp.eq.s32.totalorder %s12, 0
      %p53 = por %p51, %p52
      %p54 = scmp.ne.s32.totalorder %s46, %s48
      %p55 = scmp.eq.s32.totalorder %s17, 1
      %p56 = por %p54, %p55
      %p57 = scmp.ne.s32.totalorder %s48, %s49
      %p58 = scmp.eq.s32.totalorder %s17, 0
      %p59 = por %p57, %p58
      %p60 = scmp.ne.s32.totalorder %s48, %s49
      %p61 = scmp.eq.s32.totalorder %s18, 1
      %p62 = por %p60, %p61
      %p64 = scmp.ne.s32.totalorder %s49, %s63
      %p65 = scmp.eq.s32.totalorder %s18, 0
      %p66 = por %p64, %p65
      %s68 = sadd.s32 %s67, 1
      %p71 = scmp.eq.s32.totalorder %s12, 1
      %p72 = scmp.ne.s32.totalorder %s67, %s69
      %p73 = scmp.eq.s32.totalorder %s12, 0
      %p74 = por %p72, %p73
      %p75 = scmp.ne.s32.totalorder %s67, %s69
      %p76 = scmp.eq.s32.totalorder %s17, 1
      %p77 = por %p75, %p76
      %p78 = scmp.ne.s32.totalorder %s69, %s70
      %p79 = scmp.eq.s32.totalorder %s17, 0
      %p80 = por %p78, %p79
      %p81 = scmp.ne.s32.totalorder %s69, %s70
      %p82 = scmp.eq.s32.totalorder %s18, 1
      %p83 = por %p81, %p82
      %p85 = scmp.ne.s32.totalorder %s70, %s84
      %p86 = scmp.eq.s32.totalorder %s18, 0
      %p87 = por %p85, %p86
      %s88 = ssub.s32 %s12, %s19
      %p89 = scmp.eq.s32.totalorder %s88, 0
      %s91 = sadd.s32 %s90, 1
      %s92 = scalar_select %p89, %s90, %s91
      %p95 = pneg %p89
      %p96 = scmp.eq.s32.totalorder %s12, 1
      %p97 = por %p95, %p96
      %p98 = scmp.ne.s32.totalorder %s90, %s93
      %p99 = scmp.eq.s32.totalorder %s12, 0
      %p100 = por %p98, %p99
      %p101 = scmp.ne.s32.totalorder %s90, %s93
      %p102 = scmp.eq.s32.totalorder %s17, 1
      %p103 = por %p101, %p102
      %p104 = scmp.ne.s32.totalorder %s93, %s94
      %p105 = scmp.eq.s32.totalorder %s17, 0
      %p106 = por %p104, %p105
      %p107 = scmp.ne.s32.totalorder %s93, %s94
      %p108 = scmp.eq.s32.totalorder %s18, 1
      %p109 = por %p107, %p108
      %p111 = scmp.ne.s32.totalorder %s94, %s110
      %p112 = scmp.eq.s32.totalorder %s18, 0
      %p113 = por %p111, %p112
      %p114 = scmp.le.s32.totalorder 1, %s12
      %p115 = scmp.lt.s32.totalorder %s12, 3
      %p116 = pnand %p114, %p115
      %p117 = pneg %p116
      // Predicated region
      $region9: #{tpu_custom_call.1} parent=5 // pred_check
        _
      $region10: #{tpu_custom_call.1} parent=5 // pred_check_branch
        %119 = sbr.rel (%p116) target = $region12
      $region11: #{tpu_custom_call.1} parent=5 // pred_region
        %s120 = ssub.s32 %s12, 1
        // Predicated region
        $region13: #{tpu_custom_call.1} parent=11 // pred_check
          %p121 = pneg %p59
        $region14: #{tpu_custom_call.1} parent=11 // pred_check_branch
          %123 = sbr.rel (%p121) target = $region16
        $region15: #{tpu_custom_call.1} parent=11 // pred_region
          _
        $region16: #{tpu_custom_call.1} parent=11 // pred_fallthru
          _
        // Predicated region
        $region17: #{tpu_custom_call.1} parent=11 // pred_check
          %p124 = pneg %p80
        $region18: #{tpu_custom_call.1} parent=11 // pred_check_branch
          %126 = sbr.rel (%p124) target = $region20
        $region19: #{tpu_custom_call.1} parent=11 // pred_region
          _
        $region20: #{tpu_custom_call.1} parent=11 // pred_fallthru
          _
      $region12: #{tpu_custom_call.1} parent=5 // pred_fallthru
        _
      %p127 = scmp.lt.s32.totalorder %s12, 2
      // Predicated region
      $region21: #{tpu_custom_call.1} parent=5 // pred_check
        %p128 = pneg %p127
      $region22: #{tpu_custom_call.1} parent=5 // pred_check_branch
        %130 = sbr.rel (%p128) target = $region24
      $region23: #{tpu_custom_call.1} parent=5 // pred_region
        // Predicated region
        $region25: #{tpu_custom_call.1} parent=23 // pred_check
          %p131 = pneg %p32
        $region26: #{tpu_custom_call.1} parent=23 // pred_check_branch
          %133 = sbr.rel (%p131) target = $region28
        $region27: #{tpu_custom_call.1} parent=23 // pred_region
          %s134 = smul.u32 16, %s12
          %p135 = scmp.lt.s32.totalorder %s134, 31
          %s136 = scalar_select %p135, %s134, 31
          %s137 = smul.addr %s136, 8
          %s138 = scalar_lea.vmem %s0, %s137
          %s139 = smul.u32 16, %s12
        $region28: #{tpu_custom_call.1} parent=23 // pred_fallthru
          _
      $region24: #{tpu_custom_call.1} parent=5 // pred_fallthru
        _
      %p140 = scmp.le.s32.totalorder 1, %s12
      %p141 = scmp.lt.s32.totalorder %s12, 3
      %p142 = pnand %p140, %p141
      %p143 = pneg %p142
      // Predicated region
      $region29: #{tpu_custom_call.1} parent=5 // pred_check
        _
      $region30: #{tpu_custom_call.1} parent=5 // pred_check_branch
        %145 = sbr.rel (%p142) target = $region32
      $region31: #{tpu_custom_call.1} parent=5 // pred_region
        %s146 = ssub.s32 %s12, 1
        %s147 = smul.u32 16, %s17
        %p148 = scmp.lt.s32.totalorder %s147, 31
        %s149 = scalar_select %p148, %s147, 31
        %s150 = smul.addr %s149, 8
        %s151 = scalar_lea.vmem %s0, %s150
        %p152 = pneg %p38
        %p153 = pneg %p35
        %p154 = pneg %p59
        %p155 = pneg %p56
        %p156 = pneg %p80
        %p157 = pneg %p77
        %p158 = pneg %p106
        %p159 = pneg %p103
        %s160 = sand.u32 %s93, 1
        %s161 = scalar_lea.sflag [#allocation3], %s160
        %s162 = sand.u32 %s93, 1
        %s163 = smul.addr %s162, 128
        %s164 = scalar_lea.vmem [#allocation2], %s163
        %s165 = smul.u32 16, %s17
        %p166 = scmp.lt.s32.totalorder %s165, 31
        %s167 = scalar_select %p166, %s165, 31
        %s168 = smul.addr %s167, 8
        %s169 = scalar_lea.vmem %s0, %s168
        %s170 = smul.u32 16, %s17
        %s171 = smul.u32 16, %s17
        %v173 = vld [vmem:[%s169] sm:$0xff]
        %v174 = vld [vmem:[%s169 + $0x8] sm:$0xff]
        %v175 = vld [vmem:[%s169 + $0x10] sm:$0xff]
        %v176 = vld [vmem:[%s169 + $0x18] sm:$0xff]
        %v177 = vld [vmem:[%s169 + $0x20] sm:$0xff]
        %v178 = vld [vmem:[%s169 + $0x28] sm:$0xff]
        %v179 = vld [vmem:[%s169 + $0x30] sm:$0xff]
        %v180 = vld [vmem:[%s169 + $0x38] sm:$0xff]
        %v181 = vld [vmem:[%s169 + $0x40] sm:$0xff]
        %v182 = vld [vmem:[%s169 + $0x48] sm:$0xff]
        %v183 = vld [vmem:[%s169 + $0x50] sm:$0xff]
        %v184 = vld [vmem:[%s169 + $0x58] sm:$0xff]
        %v185 = vld [vmem:[%s169 + $0x60] sm:$0xff]
        %v186 = vld [vmem:[%s169 + $0x68] sm:$0xff]
        %v187 = vld [vmem:[%s169 + $0x70] sm:$0xff]
        %v188 = vld [vmem:[%s169 + $0x78] sm:$0xff]
        %vm189 = vcmask 261120
        %v190 = vsel %vm189, %v173, 0.0
        %191 = vadd.xlane.f32.xlu0 %v190
        %v192 = vpop.xlane.xlu0 %191
        %v193 = vsel %vm189, %v174, 0.0
        %194 = vadd.xlane.f32.xlu0 %v193
        %v195 = vpop.xlane.xlu0 %194
        %v196 = vsel %vm189, %v175, 0.0
        %197 = vadd.xlane.f32.xlu0 %v196
        %v198 = vpop.xlane.xlu0 %197
        %v199 = vsel %vm189, %v176, 0.0
        %200 = vadd.xlane.f32.xlu0 %v199
        %v201 = vpop.xlane.xlu0 %200
        %v202 = vsel %vm189, %v177, 0.0
        %203 = vadd.xlane.f32.xlu0 %v202
        %v204 = vpop.xlane.xlu0 %203
        %v205 = vsel %vm189, %v178, 0.0
        %206 = vadd.xlane.f32.xlu0 %v205
        %v207 = vpop.xlane.xlu0 %206
        %v208 = vsel %vm189, %v179, 0.0
        %209 = vadd.xlane.f32.xlu0 %v208
        %v210 = vpop.xlane.xlu0 %209
        %v211 = vsel %vm189, %v180, 0.0
        %212 = vadd.xlane.f32.xlu0 %v211
        %v213 = vpop.xlane.xlu0 %212
        %v214 = vsel %vm189, %v181, 0.0
        %215 = vadd.xlane.f32.xlu0 %v214
        %v216 = vpop.xlane.xlu0 %215
        %v217 = vsel %vm189, %v182, 0.0
        %218 = vadd.xlane.f32.xlu0 %v217
        %v219 = vpop.xlane.xlu0 %218
        %v220 = vsel %vm189, %v183, 0.0
        %221 = vadd.xlane.f32.xlu0 %v220
        %v222 = vpop.xlane.xlu0 %221
        %v223 = vsel %vm189, %v184, 0.0
        %224 = vadd.xlane.f32.xlu0 %v223
        %v225 = vpop.xlane.xlu0 %224
        %v226 = vsel %vm189, %v185, 0.0
        %227 = vadd.xlane.f32.xlu0 %v226
        %v228 = vpop.xlane.xlu0 %227
        %v229 = vsel %vm189, %v186, 0.0
        %230 = vadd.xlane.f32.xlu0 %v229
        %v231 = vpop.xlane.xlu0 %230
        %v232 = vsel %vm189, %v187, 0.0
        %233 = vadd.xlane.f32.xlu0 %v232
        %v234 = vpop.xlane.xlu0 %233
        %v235 = vsel %vm189, %v188, 0.0
        %236 = vadd.xlane.f32.xlu0 %v235
        %v237 = vpop.xlane.xlu0 %236
        %v238 = vrcp.pop 32.0
        %v239 = vmul.f32 %v192, %v238
        %v240 = vmul.f32 %v195, %v238
        %v241 = vmul.f32 %v198, %v238
        %v242 = vmul.f32 %v201, %v238
        %v243 = vmul.f32 %v204, %v238
        %v244 = vmul.f32 %v207, %v238
        %v245 = vmul.f32 %v210, %v238
        %v246 = vmul.f32 %v213, %v238
        %v247 = vmul.f32 %v216, %v238
        %v248 = vmul.f32 %v219, %v238
        %v249 = vmul.f32 %v222, %v238
        %v250 = vmul.f32 %v225, %v238
        %v251 = vmul.f32 %v228, %v238
        %v252 = vmul.f32 %v231, %v238
        %v253 = vmul.f32 %v234, %v238
        %v254 = vmul.f32 %v237, %v238
        %v255 = vsel %vm189, %v173, %v239
        %v256 = vsel %vm189, %v174, %v240
        %v257 = vsel %vm189, %v175, %v241
        %v258 = vsel %vm189, %v176, %v242
        %v259 = vsel %vm189, %v177, %v243
        %v260 = vsel %vm189, %v178, %v244
        %v261 = vsel %vm189, %v179, %v245
        %v262 = vsel %vm189, %v180, %v246
        %v263 = vsel %vm189, %v181, %v247
        %v264 = vsel %vm189, %v182, %v248
        %v265 = vsel %vm189, %v183, %v249
        %v266 = vsel %vm189, %v184, %v250
        %v267 = vsel %vm189, %v185, %v251
        %v268 = vsel %vm189, %v186, %v252
        %v269 = vsel %vm189, %v187, %v253
        %v270 = vsel %vm189, %v188, %v254
        %v271 = vld [vmem:[%s1] sm:$0xf]
        %v272 = vld [vmem:[%s1 + $0x4] sm:$0xf]
        %v273 = vld [vmem:[%s1 + $0x8] sm:$0xf]
        %v274 = vld [vmem:[%s1 + $0xc] sm:$0xf]
        %v275 = vld [vmem:[%s1 + $0x10] sm:$0xf]
        %v276 = vld [vmem:[%s1 + $0x18] sm:$0xf]
        %v277 = vld [vmem:[%s1 + $0x1c] sm:$0xf]
        %v278 = vld [vmem:[%s1 + $0x20] sm:$0xf]
        %v279 = vld [vmem:[%s1 + $0x24] sm:$0xf]
        %v280 = vld [vmem:[%s1 + $0x28] sm:$0xf]
        %v281 = vld [vmem:[%s1 + $0x2c] sm:$0xf]
        %v282 = vld [vmem:[%s1 + $0x30] sm:$0xf]
        %v283 = vld [vmem:[%s1 + $0x34] sm:$0xf]
        %v284 = vld [vmem:[%s2] sm:$0xff]
        %v285 = vpack.c.bf16 %v256, %v255
        %v286 = vpack.c.bf16 %v258, %v257
        %v287 = vpack.c.bf16 %v260, %v259
        %v288 = vpack.c.bf16 %v262, %v261
        %v289 = vpack.c.bf16 %v264, %v263
        %v290 = vpack.c.bf16 %v266, %v265
        %v291 = vpack.c.bf16 %v268, %v267
        %v292 = vpack.c.bf16 %v270, %v269
        %v293 = vlaneseq
        %v294 = vshrl.u32 %v293, 7
        %v295 = vsub.s32 0, %v294
        %v296 = vrot.slane %v284, %v295
        %v302 = vunpack.c.l.b16 %v271
        %v303 = vunpack.c.l.b16 %v272
        %v304 = vunpack.c.l.b16 %v273
        %v305 = vunpack.c.l.b16 %v274
        %v306 = vunpack.c.l.b16 %v275
        %v307 = vpack.c.b16 %v303, %v302
        %v308 = vpack.c.b16 %v305, %v304
        %v309 = vpack.c.b16 %v306, %v306
        %vm312 = vcmask 269312
        %v314 = vsel %vm312, %v285, 0
        %v317 = vsel %vm312, %v286, 0
        %v320 = vsel %vm312, %v287, 0
        %v323 = vsel %vm312, %v288, 0
        %v326 = vsel %vm312, %v289, 0
        %v329 = vsel %vm312, %v290, 0
        %v332 = vsel %vm312, %v291, 0
        %v335 = vsel %vm312, %v292, 0
        %vm337 = vcmask 1040384
        %v338 = vsel 0, 4294967295, 65535
        %v339 = vsel %vm337, %v338, 0
        %v341 = vand.u32 %v309, %v339
        %343 = vmatprep.subr.bf16.mxu0 0
        %344 = vmatpush1.bf16.msra.mxu0 %v307
        %345 = vmatprep.subr.bf16.mxu0 0
        %346 = vmatpush1.bf16.msra.mxu0 %v308
        %347 = vmatprep.subr.bf16.mxu0 0
        %348 = vmatpush1.bf16.msra.mxu0 %v341
        %349 = vmatprep.subr.bf16.mxu0 0
        %350 = vmatpush1.bf16.msra.mxu0 0
        %351 = vmatprep.subr.bf16.mxu0 0
        %352 = vmatpush1.bf16.msra.mxu0 0
        %353 = vmatprep.subr.bf16.mxu0 0
        %354 = vmatpush1.bf16.msra.mxu0 0
        %355 = vmatprep.subr.bf16.mxu0 0
        %356 = vmatpush1.bf16.msra.mxu0 0
        %357 = vmatprep.subr.bf16.mxu0 0
        %358 = vmatpush1.bf16.msra.mxu0 0
        %359 = vmatprep.subr.bf16.mxu0 0
        %360 = vmatpush1.bf16.msra.mxu0 0
        %361 = vmatprep.subr.bf16.mxu0 0
        %362 = vmatpush1.bf16.msra.mxu0 0
        %363 = vmatprep.subr.bf16.mxu0 0
        %364 = vmatpush1.bf16.msra.mxu0 0
        %365 = vmatprep.subr.bf16.mxu0 0
        %366 = vmatpush1.bf16.msra.mxu0 0
        %367 = vmatprep.subr.bf16.mxu0 0
        %368 = vmatpush1.bf16.msra.mxu0 0
        %369 = vmatprep.subr.bf16.mxu0 0
        %370 = vmatpush1.bf16.msra.mxu0 0
        %371 = vmatprep.subr.bf16.mxu0 0
        %372 = vmatpush1.bf16.msra.mxu0 0
        %373 = vmatprep.subr.bf16.mxu0 0
        %374 = vmatpush1.bf16.msra.mxu0 0
        %375 = vmatprep.mubr.bf16.mxu0 0
        %376 = vmatmul.mubr.bf16.gmra.mrb[0].mxu0 %v314
        %v377 = vpop.f32.mrb[0].mxu0
        %v378 = vadd.f32 %v296, %v377
        %v379 = vpop.f32.mrb[0].mxu0
        %v380 = vpop.f32.mrb[0].mxu0
        %v381 = vadd.f32 %v296, %v380
        %v382 = vpop.f32.mrb[0].mxu0
        %383 = vmatprep.mubr.bf16.mxu0 0
        %384 = vmatmul.mubr.bf16.gmra.mrb[0].mxu0 %v317
        %v385 = vpop.f32.mrb[0].mxu0
        %v386 = vadd.f32 %v296, %v385
        %v387 = vpop.f32.mrb[0].mxu0
        %v388 = vpop.f32.mrb[0].mxu0
        %v389 = vadd.f32 %v296, %v388
        %v390 = vpop.f32.mrb[0].mxu0
        %391 = vmatprep.mubr.bf16.mxu0 0
        %392 = vmatmul.mubr.bf16.gmra.mrb[0].mxu0 %v320
        %v393 = vpop.f32.mrb[0].mxu0
        %v394 = vadd.f32 %v296, %v393
        %v395 = vpop.f32.mrb[0].mxu0
        %v396 = vpop.f32.mrb[0].mxu0
        %v397 = vadd.f32 %v296, %v396
        %v398 = vpop.f32.mrb[0].mxu0
        %399 = vmatprep.mubr.bf16.mxu0 0
        %400 = vmatmul.mubr.bf16.gmra.mrb[0].mxu0 %v323
        %v401 = vpop.f32.mrb[0].mxu0
        %v402 = vadd.f32 %v296, %v401
        %v403 = vpop.f32.mrb[0].mxu0
        %v404 = vpop.f32.mrb[0].mxu0
        %v405 = vadd.f32 %v296, %v404
        %v406 = vpop.f32.mrb[0].mxu0
        %407 = vmatprep.mubr.bf16.mxu0 0
        %408 = vmatmul.mubr.bf16.gmra.mrb[0].mxu0 %v326
        %v409 = vpop.f32.mrb[0].mxu0
        %v410 = vadd.f32 %v296, %v409
        %v411 = vpop.f32.mrb[0].mxu0
        %v412 = vpop.f32.mrb[0].mxu0
        %v413 = vadd.f32 %v296, %v412
        %v414 = vpop.f32.mrb[0].mxu0
        %415 = vmatprep.mubr.bf16.mxu0 0
        %416 = vmatmul.mubr.bf16.gmra.mrb[0].mxu0 %v329
        %v417 = vpop.f32.mrb[0].mxu0
        %v418 = vadd.f32 %v296, %v417
        %v419 = vpop.f32.mrb[0].mxu0
        %v420 = vpop.f32.mrb[0].mxu0
        %v421 = vadd.f32 %v296, %v420
        %v422 = vpop.f32.mrb[0].mxu0
        %423 = vmatprep.mubr.bf16.mxu0 0
        %424 = vmatmul.mubr.bf16.gmra.mrb[0].mxu0 %v332
        %v425 = vpop.f32.mrb[0].mxu0
        %v426 = vadd.f32 %v296, %v425
        %v427 = vpop.f32.mrb[0].mxu0
        %v428 = vpop.f32.mrb[0].mxu0
        %v429 = vadd.f32 %v296, %v428
        %v430 = vpop.f32.mrb[0].mxu0
        %431 = vmatprep.mubr.bf16.mxu0 0
        %432 = vmatmul.mubr.bf16.gmra.mrb[0].mxu0 %v335
        %v433 = vpop.f32.mrb[0].mxu0
        %v434 = vadd.f32 %v296, %v433
        %v435 = vpop.f32.mrb[0].mxu0
        %v436 = vpop.f32.mrb[0].mxu0
        %v437 = vadd.f32 %v296, %v436
        %v438 = vpop.f32.mrb[0].mxu0
        %439 = vdwg.mxu0
        %v440 = vsel %vm189, %v378, 0.0
        %441 = vadd.xlane.f32.xlu0 %v440
        %v442 = vpop.xlane.xlu0 %441
        %v443 = vsel %vm189, %v381, 0.0
        %444 = vadd.xlane.f32.xlu0 %v443
        %v445 = vpop.xlane.xlu0 %444
        %v446 = vsel %vm189, %v386, 0.0
        %447 = vadd.xlane.f32.xlu0 %v446
        %v448 = vpop.xlane.xlu0 %447
        %v449 = vsel %vm189, %v389, 0.0
        %450 = vadd.xlane.f32.xlu0 %v449
        %v451 = vpop.xlane.xlu0 %450
        %v452 = vsel %vm189, %v394, 0.0
        %453 = vadd.xlane.f32.xlu0 %v452
        %v454 = vpop.xlane.xlu0 %453
        %v455 = vsel %vm189, %v397, 0.0
        %456 = vadd.xlane.f32.xlu0 %v455
        %v457 = vpop.xlane.xlu0 %456
        %v458 = vsel %vm189, %v402, 0.0
        %459 = vadd.xlane.f32.xlu0 %v458
        %v460 = vpop.xlane.xlu0 %459
        %v461 = vsel %vm189, %v405, 0.0
        %462 = vadd.xlane.f32.xlu0 %v461
        %v463 = vpop.xlane.xlu0 %462
        %v464 = vsel %vm189, %v410, 0.0
        %465 = vadd.xlane.f32.xlu0 %v464
        %v466 = vpop.xlane.xlu0 %465
        %v467 = vsel %vm189, %v413, 0.0
        %468 = vadd.xlane.f32.xlu0 %v467
        %v469 = vpop.xlane.xlu0 %468
        %v470 = vsel %vm189, %v418, 0.0
        %471 = vadd.xlane.f32.xlu0 %v470
        %v472 = vpop.xlane.xlu0 %471
        %v473 = vsel %vm189, %v421, 0.0
        %474 = vadd.xlane.f32.xlu0 %v473
        %v475 = vpop.xlane.xlu0 %474
        %v476 = vsel %vm189, %v426, 0.0
        %477 = vadd.xlane.f32.xlu0 %v476
        %v478 = vpop.xlane.xlu0 %477
        %v479 = vsel %vm189, %v429, 0.0
        %480 = vadd.xlane.f32.xlu0 %v479
        %v481 = vpop.xlane.xlu0 %480
        %v482 = vsel %vm189, %v434, 0.0
        %483 = vadd.xlane.f32.xlu0 %v482
        %v484 = vpop.xlane.xlu0 %483
        %v485 = vsel %vm189, %v437, 0.0
        %486 = vadd.xlane.f32.xlu0 %v485
        %v487 = vpop.xlane.xlu0 %486
        %v488 = vmul.f32 %v442, %v238
        %v489 = vmul.f32 %v445, %v238
        %v490 = vmul.f32 %v448, %v238
        %v491 = vmul.f32 %v451, %v238
        %v492 = vmul.f32 %v454, %v238
        %v493 = vmul.f32 %v457, %v238
        %v494 = vmul.f32 %v460, %v238
        %v495 = vmul.f32 %v463, %v238
        %v496 = vmul.f32 %v466, %v238
        %v497 = vmul.f32 %v469, %v238
        %v498 = vmul.f32 %v472, %v238
        %v499 = vmul.f32 %v475, %v238
        %v500 = vmul.f32 %v478, %v238
        %v501 = vmul.f32 %v481, %v238
        %v502 = vmul.f32 %v484, %v238
        %v503 = vmul.f32 %v487, %v238
        %v504 = vsub.f32 %v378, %v488
        %v505 = vsub.f32 %v381, %v489
        %v506 = vsub.f32 %v386, %v490
        %v507 = vsub.f32 %v389, %v491
        %v508 = vsub.f32 %v394, %v492
        %v509 = vsub.f32 %v397, %v493
        %v510 = vsub.f32 %v402, %v494
        %v511 = vsub.f32 %v405, %v495
        %v512 = vsub.f32 %v410, %v496
        %v513 = vsub.f32 %v413, %v497
        %v514 = vsub.f32 %v418, %v498
        %v515 = vsub.f32 %v421, %v499
        %v516 = vsub.f32 %v426, %v500
        %v517 = vsub.f32 %v429, %v501
        %v518 = vsub.f32 %v434, %v502
        %v519 = vsub.f32 %v437, %v503
        %v520 = vmul.f32 %v504, %v504
        %v521 = vmul.f32 %v505, %v505
        %v522 = vmul.f32 %v506, %v506
        %v523 = vmul.f32 %v507, %v507
        %v524 = vmul.f32 %v508, %v508
        %v525 = vmul.f32 %v509, %v509
        %v526 = vmul.f32 %v510, %v510
        %v527 = vmul.f32 %v511, %v511
        %v528 = vmul.f32 %v512, %v512
        %v529 = vmul.f32 %v513, %v513
        %v530 = vmul.f32 %v514, %v514
        %v531 = vmul.f32 %v515, %v515
        %v532 = vmul.f32 %v516, %v516
        %v533 = vmul.f32 %v517, %v517
        %v534 = vmul.f32 %v518, %v518
        %v535 = vmul.f32 %v519, %v519
        %v536 = vsel %vm189, %v520, 0.0
        %537 = vadd.xlane.f32.xlu0 %v536
        %v538 = vpop.xlane.xlu0 %537
        %v539 = vsel %vm189, %v521, 0.0
        %540 = vadd.xlane.f32.xlu0 %v539
        %v541 = vpop.xlane.xlu0 %540
        %v542 = vsel %vm189, %v522, 0.0
        %543 = vadd.xlane.f32.xlu0 %v542
        %v544 = vpop.xlane.xlu0 %543
        %v545 = vsel %vm189, %v523, 0.0
        %546 = vadd.xlane.f32.xlu0 %v545
        %v547 = vpop.xlane.xlu0 %546
        %v548 = vsel %vm189, %v524, 0.0
        %549 = vadd.xlane.f32.xlu0 %v548
        %v550 = vpop.xlane.xlu0 %549
        %v551 = vsel %vm189, %v525, 0.0
        %552 = vadd.xlane.f32.xlu0 %v551
        %v553 = vpop.xlane.xlu0 %552
        %v554 = vsel %vm189, %v526, 0.0
        %555 = vadd.xlane.f32.xlu0 %v554
        %v556 = vpop.xlane.xlu0 %555
        %v557 = vsel %vm189, %v527, 0.0
        %558 = vadd.xlane.f32.xlu0 %v557
        %v559 = vpop.xlane.xlu0 %558
        %v560 = vsel %vm189, %v528, 0.0
        %561 = vadd.xlane.f32.xlu0 %v560
        %v562 = vpop.xlane.xlu0 %561
        %v563 = vsel %vm189, %v529, 0.0
        %564 = vadd.xlane.f32.xlu0 %v563
        %v565 = vpop.xlane.xlu0 %564
        %v566 = vsel %vm189, %v530, 0.0
        %567 = vadd.xlane.f32.xlu0 %v566
        %v568 = vpop.xlane.xlu0 %567
        %v569 = vsel %vm189, %v531, 0.0
        %570 = vadd.xlane.f32.xlu0 %v569
        %v571 = vpop.xlane.xlu0 %570
        %v572 = vsel %vm189, %v532, 0.0
        %573 = vadd.xlane.f32.xlu0 %v572
        %v574 = vpop.xlane.xlu0 %573
        %v575 = vsel %vm189, %v533, 0.0
        %576 = vadd.xlane.f32.xlu0 %v575
        %v577 = vpop.xlane.xlu0 %576
        %v578 = vsel %vm189, %v534, 0.0
        %579 = vadd.xlane.f32.xlu0 %v578
        %v580 = vpop.xlane.xlu0 %579
        %v581 = vsel %vm189, %v535, 0.0
        %582 = vadd.xlane.f32.xlu0 %v581
        %v583 = vpop.xlane.xlu0 %582
        %v584 = vmul.f32 %v538, %v238
        %v585 = vmul.f32 %v541, %v238
        %v586 = vmul.f32 %v544, %v238
        %v587 = vmul.f32 %v547, %v238
        %v588 = vmul.f32 %v550, %v238
        %v589 = vmul.f32 %v553, %v238
        %v590 = vmul.f32 %v556, %v238
        %v591 = vmul.f32 %v559, %v238
        %v592 = vmul.f32 %v562, %v238
        %v593 = vmul.f32 %v565, %v238
        %v594 = vmul.f32 %v568, %v238
        %v595 = vmul.f32 %v571, %v238
        %v596 = vmul.f32 %v574, %v238
        %v597 = vmul.f32 %v577, %v238
        %v598 = vmul.f32 %v580, %v238
        %v599 = vmul.f32 %v583, %v238
        %v600 = vadd.f32 %v584, 1e-05
        %v601 = vadd.f32 %v585, 1e-05
        %v602 = vadd.f32 %v586, 1e-05
        %v603 = vadd.f32 %v587, 1e-05
        %v604 = vadd.f32 %v588, 1e-05
        %v605 = vadd.f32 %v589, 1e-05
        %v606 = vadd.f32 %v590, 1e-05
        %v607 = vadd.f32 %v591, 1e-05
        %v608 = vadd.f32 %v592, 1e-05
        %v609 = vadd.f32 %v593, 1e-05
        %v610 = vadd.f32 %v594, 1e-05
        %v611 = vadd.f32 %v595, 1e-05
        %v612 = vadd.f32 %v596, 1e-05
        %v613 = vadd.f32 %v597, 1e-05
        %v614 = vadd.f32 %v598, 1e-05
        %v615 = vadd.f32 %v599, 1e-05
        %v616 = vrsqrt.pop %v600
        %v617 = vrsqrt.pop %v601
        %v618 = vrsqrt.pop %v602
        %v619 = vrsqrt.pop %v603
        %v620 = vrsqrt.pop %v604
        %v621 = vrsqrt.pop %v605
        %v622 = vrsqrt.pop %v606
        %v623 = vrsqrt.pop %v607
        %v624 = vrsqrt.pop %v608
        %v625 = vrsqrt.pop %v609
        %v626 = vrsqrt.pop %v610
        %v627 = vrsqrt.pop %v611
        %v628 = vrsqrt.pop %v612
        %v629 = vrsqrt.pop %v613
        %v630 = vrsqrt.pop %v614
        %v631 = vrsqrt.pop %v615
        %v632 = vmul.f32 %v504, %v616
        %v633 = vmul.f32 %v505, %v617
        %v634 = vmul.f32 %v506, %v618
        %v635 = vmul.f32 %v507, %v619
        %v636 = vmul.f32 %v508, %v620
        %v637 = vmul.f32 %v509, %v621
        %v638 = vmul.f32 %v510, %v622
        %v639 = vmul.f32 %v511, %v623
        %v640 = vmul.f32 %v512, %v624
        %v641 = vmul.f32 %v513, %v625
        %v642 = vmul.f32 %v514, %v626
        %v643 = vmul.f32 %v515, %v627
        %v644 = vmul.f32 %v516, %v628
        %v645 = vmul.f32 %v517, %v629
        %v646 = vmul.f32 %v518, %v630
        %v647 = vmul.f32 %v519, %v631
        %v648 = vlaneseq
        %v649 = vshrl.u32 %v648, 7
        %v650 = vsub.s32 1, %v649
        %v651 = vrot.slane %v284, %v650
        %v652 = vmul.f32 %v632, %v651
        %v653 = vmul.f32 %v633, %v651
        %v654 = vmul.f32 %v634, %v651
        %v655 = vmul.f32 %v635, %v651
        %v656 = vmul.f32 %v636, %v651
        %v657 = vmul.f32 %v637, %v651
        %v658 = vmul.f32 %v638, %v651
        %v659 = vmul.f32 %v639, %v651
        %v660 = vmul.f32 %v640, %v651
        %v661 = vmul.f32 %v641, %v651
        %v662 = vmul.f32 %v642, %v651
        %v663 = vmul.f32 %v643, %v651
        %v664 = vmul.f32 %v644, %v651
        %v665 = vmul.f32 %v645, %v651
        %v666 = vmul.f32 %v646, %v651
        %v667 = vmul.f32 %v647, %v651
        %v668 = vlaneseq
        %v669 = vshrl.u32 %v668, 7
        %v670 = vsub.s32 2, %v669
        %v671 = vrot.slane %v284, %v670
        %v672 = vadd.f32 %v652, %v671
        %v673 = vadd.f32 %v653, %v671
        %v674 = vadd.f32 %v654, %v671
        %v675 = vadd.f32 %v655, %v671
        %v676 = vadd.f32 %v656, %v671
        %v677 = vadd.f32 %v657, %v671
        %v678 = vadd.f32 %v658, %v671
        %v679 = vadd.f32 %v659, %v671
        %v680 = vadd.f32 %v660, %v671
        %v681 = vadd.f32 %v661, %v671
        %v682 = vadd.f32 %v662, %v671
        %v683 = vadd.f32 %v663, %v671
        %v684 = vadd.f32 %v664, %v671
        %v685 = vadd.f32 %v665, %v671
        %v686 = vadd.f32 %v666, %v671
        %v687 = vadd.f32 %v667, %v671
        %v688 = vmax.f32 %v672, 0.0
        %v689 = vmax.f32 %v673, 0.0
        %v690 = vmax.f32 %v674, 0.0
        %v691 = vmax.f32 %v675, 0.0
        %v692 = vmax.f32 %v676, 0.0
        %v693 = vmax.f32 %v677, 0.0
        %v694 = vmax.f32 %v678, 0.0
        %v695 = vmax.f32 %v679, 0.0
        %v696 = vmax.f32 %v680, 0.0
        %v697 = vmax.f32 %v681, 0.0
        %v698 = vmax.f32 %v682, 0.0
        %v699 = vmax.f32 %v683, 0.0
        %v700 = vmax.f32 %v684, 0.0
        %v701 = vmax.f32 %v685, 0.0
        %v702 = vmax.f32 %v686, 0.0
        %v703 = vmax.f32 %v687, 0.0
        %v704 = vpack.c.bf16 %v689, %v688
        %v705 = vpack.c.bf16 %v691, %v690
        %v706 = vpack.c.bf16 %v693, %v692
        %v707 = vpack.c.bf16 %v695, %v694
        %v708 = vpack.c.bf16 %v697, %v696
        %v709 = vpack.c.bf16 %v699, %v698
        %v710 = vpack.c.bf16 %v701, %v700
        %v711 = vpack.c.bf16 %v703, %v702
        %v712 = vlaneseq
        %v713 = vshrl.u32 %v712, 7
        %v714 = vsub.s32 3, %v713
        %v715 = vrot.slane %v284, %v714
        %v720 = vunpack.c.l.b16 %v276
        %v721 = vunpack.c.l.b16 %v277
        %v722 = vunpack.c.l.b16 %v278
        %v723 = vunpack.c.l.b16 %v279
        %v724 = vpack.c.b16 %v721, %v720
        %v725 = vpack.c.b16 %v723, %v722
        %v729 = vsel %vm189, %v704, 0
        %v732 = vsel %vm189, %v705, 0
        %v735 = vsel %vm189, %v706, 0
        %v738 = vsel %vm189, %v707, 0
        %v741 = vsel %vm189, %v708, 0
        %v744 = vsel %vm189, %v709, 0
        %v747 = vsel %vm189, %v710, 0
        %v750 = vsel %vm189, %v711, 0
        %752 = vmatprep.subr.bf16.mxu0 0
        %753 = vmatpush1.bf16.msra.mxu0 %v724
        %754 = vmatprep.subr.bf16.mxu0 0
        %755 = vmatpush1.bf16.msra.mxu0 %v725
        %756 = vmatprep.subr.bf16.mxu0 0
        %757 = vmatpush1.bf16.msra.mxu0 0
        %758 = vmatprep.subr.bf16.mxu0 0
        %759 = vmatpush1.bf16.msra.mxu0 0
        %760 = vmatprep.subr.bf16.mxu0 0
        %761 = vmatpush1.bf16.msra.mxu0 0
        %762 = vmatprep.subr.bf16.mxu0 0
        %763 = vmatpush1.bf16.msra.mxu0 0
        %764 = vmatprep.subr.bf16.mxu0 0
        %765 = vmatpush1.bf16.msra.mxu0 0
        %766 = vmatprep.subr.bf16.mxu0 0
        %767 = vmatpush1.bf16.msra.mxu0 0
        %768 = vmatprep.subr.bf16.mxu0 0
        %769 = vmatpush1.bf16.msra.mxu0 0
        %770 = vmatprep.subr.bf16.mxu0 0
        %771 = vmatpush1.bf16.msra.mxu0 0
        %772 = vmatprep.subr.bf16.mxu0 0
        %773 = vmatpush1.bf16.msra.mxu0 0
        %774 = vmatprep.subr.bf16.mxu0 0
        %775 = vmatpush1.bf16.msra.mxu0 0
        %776 = vmatprep.subr.bf16.mxu0 0
        %777 = vmatpush1.bf16.msra.mxu0 0
        %778 = vmatprep.subr.bf16.mxu0 0
        %779 = vmatpush1.bf16.msra.mxu0 0
        %780 = vmatprep.subr.bf16.mxu0 0
        %781 = vmatpush1.bf16.msra.mxu0 0
        %782 = vmatprep.subr.bf16.mxu0 0
        %783 = vmatpush1.bf16.msra.mxu0 0
        %784 = vmatprep.mubr.bf16.mxu0 0
        %785 = vmatmul.mubr.bf16.gmra.mrb[0].mxu0 %v729
        %v786 = vpop.f32.mrb[0].mxu0
        %v787 = vadd.f32 %v715, %v786
        %v788 = vpop.f32.mrb[0].mxu0
        %v789 = vpop.f32.mrb[0].mxu0
        %v790 = vadd.f32 %v715, %v789
        %v791 = vpop.f32.mrb[0].mxu0
        %792 = vmatprep.mubr.bf16.mxu0 0
        %793 = vmatmul.mubr.bf16.gmra.mrb[0].mxu0 %v732
        %v794 = vpop.f32.mrb[0].mxu0
        %v795 = vadd.f32 %v715, %v794
        %v796 = vpop.f32.mrb[0].mxu0
        %v797 = vpop.f32.mrb[0].mxu0
        %v798 = vadd.f32 %v715, %v797
        %v799 = vpop.f32.mrb[0].mxu0
        %800 = vmatprep.mubr.bf16.mxu0 0
        %801 = vmatmul.mubr.bf16.gmra.mrb[0].mxu0 %v735
        %v802 = vpop.f32.mrb[0].mxu0
        %v803 = vadd.f32 %v715, %v802
        %v804 = vpop.f32.mrb[0].mxu0
        %v805 = vpop.f32.mrb[0].mxu0
        %v806 = vadd.f32 %v715, %v805
        %v807 = vpop.f32.mrb[0].mxu0
        %808 = vmatprep.mubr.bf16.mxu0 0
        %809 = vmatmul.mubr.bf16.gmra.mrb[0].mxu0 %v738
        %v810 = vpop.f32.mrb[0].mxu0
        %v811 = vadd.f32 %v715, %v810
        %v812 = vpop.f32.mrb[0].mxu0
        %v813 = vpop.f32.mrb[0].mxu0
        %v814 = vadd.f32 %v715, %v813
        %v815 = vpop.f32.mrb[0].mxu0
        %816 = vmatprep.mubr.bf16.mxu0 0
        %817 = vmatmul.mubr.bf16.gmra.mrb[0].mxu0 %v741
        %v818 = vpop.f32.mrb[0].mxu0
        %v819 = vadd.f32 %v715, %v818
        %v820 = vpop.f32.mrb[0].mxu0
        %v821 = vpop.f32.mrb[0].mxu0
        %v822 = vadd.f32 %v715, %v821
        %v823 = vpop.f32.mrb[0].mxu0
        %824 = vmatprep.mubr.bf16.mxu0 0
        %825 = vmatmul.mubr.bf16.gmra.mrb[0].mxu0 %v744
        %v826 = vpop.f32.mrb[0].mxu0
        %v827 = vadd.f32 %v715, %v826
        %v828 = vpop.f32.mrb[0].mxu0
        %v829 = vpop.f32.mrb[0].mxu0
        %v830 = vadd.f32 %v715, %v829
        %v831 = vpop.f32.mrb[0].mxu0
        %832 = vmatprep.mubr.bf16.mxu0 0
        %833 = vmatmul.mubr.bf16.gmra.mrb[0].mxu0 %v747
        %v834 = vpop.f32.mrb[0].mxu0
        %v835 = vadd.f32 %v715, %v834
        %v836 = vpop.f32.mrb[0].mxu0
        %v837 = vpop.f32.mrb[0].mxu0
        %v838 = vadd.f32 %v715, %v837
        %v839 = vpop.f32.mrb[0].mxu0
        %840 = vmatprep.mubr.bf16.mxu0 0
        %841 = vmatmul.mubr.bf16.gmra.mrb[0].mxu0 %v750
        %v842 = vpop.f32.mrb[0].mxu0
        %v843 = vadd.f32 %v715, %v842
        %v844 = vpop.f32.mrb[0].mxu0
        %v845 = vpop.f32.mrb[0].mxu0
        %v846 = vadd.f32 %v715, %v845
        %v847 = vpop.f32.mrb[0].mxu0
        %848 = vdwg.mxu0
        %v849 = vsel %vm189, %v787, 0.0
        %850 = vadd.xlane.f32.xlu0 %v849
        %v851 = vpop.xlane.xlu0 %850
        %v852 = vsel %vm189, %v790, 0.0
        %853 = vadd.xlane.f32.xlu0 %v852
        %v854 = vpop.xlane.xlu0 %853
        %v855 = vsel %vm189, %v795, 0.0
        %856 = vadd.xlane.f32.xlu0 %v855
        %v857 = vpop.xlane.xlu0 %856
        %v858 = vsel %vm189, %v798, 0.0
        %859 = vadd.xlane.f32.xlu0 %v858
        %v860 = vpop.xlane.xlu0 %859
        %v861 = vsel %vm189, %v803, 0.0
        %862 = vadd.xlane.f32.xlu0 %v861
        %v863 = vpop.xlane.xlu0 %862
        %v864 = vsel %vm189, %v806, 0.0
        %865 = vadd.xlane.f32.xlu0 %v864
        %v866 = vpop.xlane.xlu0 %865
        %v867 = vsel %vm189, %v811, 0.0
        %868 = vadd.xlane.f32.xlu0 %v867
        %v869 = vpop.xlane.xlu0 %868
        %v870 = vsel %vm189, %v814, 0.0
        %871 = vadd.xlane.f32.xlu0 %v870
        %v872 = vpop.xlane.xlu0 %871
        %v873 = vsel %vm189, %v819, 0.0
        %874 = vadd.xlane.f32.xlu0 %v873
        %v875 = vpop.xlane.xlu0 %874
        %v876 = vsel %vm189, %v822, 0.0
        %877 = vadd.xlane.f32.xlu0 %v876
        %v878 = vpop.xlane.xlu0 %877
        %v879 = vsel %vm189, %v827, 0.0
        %880 = vadd.xlane.f32.xlu0 %v879
        %v881 = vpop.xlane.xlu0 %880
        %v882 = vsel %vm189, %v830, 0.0
        %883 = vadd.xlane.f32.xlu0 %v882
        %v884 = vpop.xlane.xlu0 %883
        %v885 = vsel %vm189, %v835, 0.0
        %886 = vadd.xlane.f32.xlu0 %v885
        %v887 = vpop.xlane.xlu0 %886
        %v888 = vsel %vm189, %v838, 0.0
        %889 = vadd.xlane.f32.xlu0 %v888
        %v890 = vpop.xlane.xlu0 %889
        %v891 = vsel %vm189, %v843, 0.0
        %892 = vadd.xlane.f32.xlu0 %v891
        %v893 = vpop.xlane.xlu0 %892
        %v894 = vsel %vm189, %v846, 0.0
        %895 = vadd.xlane.f32.xlu0 %v894
        %v896 = vpop.xlane.xlu0 %895
        %v897 = vmul.f32 %v851, %v238
        %v898 = vmul.f32 %v854, %v238
        %v899 = vmul.f32 %v857, %v238
        %v900 = vmul.f32 %v860, %v238
        %v901 = vmul.f32 %v863, %v238
        %v902 = vmul.f32 %v866, %v238
        %v903 = vmul.f32 %v869, %v238
        %v904 = vmul.f32 %v872, %v238
        %v905 = vmul.f32 %v875, %v238
        %v906 = vmul.f32 %v878, %v238
        %v907 = vmul.f32 %v881, %v238
        %v908 = vmul.f32 %v884, %v238
        %v909 = vmul.f32 %v887, %v238
        %v910 = vmul.f32 %v890, %v238
        %v911 = vmul.f32 %v893, %v238
        %v912 = vmul.f32 %v896, %v238
        %v913 = vsub.f32 %v787, %v897
        %v914 = vsub.f32 %v790, %v898
        %v915 = vsub.f32 %v795, %v899
        %v916 = vsub.f32 %v798, %v900
        %v917 = vsub.f32 %v803, %v901
        %v918 = vsub.f32 %v806, %v902
        %v919 = vsub.f32 %v811, %v903
        %v920 = vsub.f32 %v814, %v904
        %v921 = vsub.f32 %v819, %v905
        %v922 = vsub.f32 %v822, %v906
        %v923 = vsub.f32 %v827, %v907
        %v924 = vsub.f32 %v830, %v908
        %v925 = vsub.f32 %v835, %v909
        %v926 = vsub.f32 %v838, %v910
        %v927 = vsub.f32 %v843, %v911
        %v928 = vsub.f32 %v846, %v912
        %v929 = vmul.f32 %v913, %v913
        %v930 = vmul.f32 %v914, %v914
        %v931 = vmul.f32 %v915, %v915
        %v932 = vmul.f32 %v916, %v916
        %v933 = vmul.f32 %v917, %v917
        %v934 = vmul.f32 %v918, %v918
        %v935 = vmul.f32 %v919, %v919
        %v936 = vmul.f32 %v920, %v920
        %v937 = vmul.f32 %v921, %v921
        %v938 = vmul.f32 %v922, %v922
        %v939 = vmul.f32 %v923, %v923
        %v940 = vmul.f32 %v924, %v924
        %v941 = vmul.f32 %v925, %v925
        %v942 = vmul.f32 %v926, %v926
        %v943 = vmul.f32 %v927, %v927
        %v944 = vmul.f32 %v928, %v928
        %v945 = vsel %vm189, %v929, 0.0
        %946 = vadd.xlane.f32.xlu0 %v945
        %v947 = vpop.xlane.xlu0 %946
        %v948 = vsel %vm189, %v930, 0.0
        %949 = vadd.xlane.f32.xlu0 %v948
        %v950 = vpop.xlane.xlu0 %949
        %v951 = vsel %vm189, %v931, 0.0
        %952 = vadd.xlane.f32.xlu0 %v951
        %v953 = vpop.xlane.xlu0 %952
        %v954 = vsel %vm189, %v932, 0.0
        %955 = vadd.xlane.f32.xlu0 %v954
        %v956 = vpop.xlane.xlu0 %955
        %v957 = vsel %vm189, %v933, 0.0
        %958 = vadd.xlane.f32.xlu0 %v957
        %v959 = vpop.xlane.xlu0 %958
        %v960 = vsel %vm189, %v934, 0.0
        %961 = vadd.xlane.f32.xlu0 %v960
        %v962 = vpop.xlane.xlu0 %961
        %v963 = vsel %vm189, %v935, 0.0
        %964 = vadd.xlane.f32.xlu0 %v963
        %v965 = vpop.xlane.xlu0 %964
        %v966 = vsel %vm189, %v936, 0.0
        %967 = vadd.xlane.f32.xlu0 %v966
        %v968 = vpop.xlane.xlu0 %967
        %v969 = vsel %vm189, %v937, 0.0
        %970 = vadd.xlane.f32.xlu0 %v969
        %v971 = vpop.xlane.xlu0 %970
        %v972 = vsel %vm189, %v938, 0.0
        %973 = vadd.xlane.f32.xlu0 %v972
        %v974 = vpop.xlane.xlu0 %973
        %v975 = vsel %vm189, %v939, 0.0
        %976 = vadd.xlane.f32.xlu0 %v975
        %v977 = vpop.xlane.xlu0 %976
        %v978 = vsel %vm189, %v940, 0.0
        %979 = vadd.xlane.f32.xlu0 %v978
        %v980 = vpop.xlane.xlu0 %979
        %v981 = vsel %vm189, %v941, 0.0
        %982 = vadd.xlane.f32.xlu0 %v981
        %v983 = vpop.xlane.xlu0 %982
        %v984 = vsel %vm189, %v942, 0.0
        %985 = vadd.xlane.f32.xlu0 %v984
        %v986 = vpop.xlane.xlu0 %985
        %v987 = vsel %vm189, %v943, 0.0
        %988 = vadd.xlane.f32.xlu0 %v987
        %v989 = vpop.xlane.xlu0 %988
        %v990 = vsel %vm189, %v944, 0.0
        %991 = vadd.xlane.f32.xlu0 %v990
        %v992 = vpop.xlane.xlu0 %991
        %v993 = vmul.f32 %v947, %v238
        %v994 = vmul.f32 %v950, %v238
        %v995 = vmul.f32 %v953, %v238
        %v996 = vmul.f32 %v956, %v238
        %v997 = vmul.f32 %v959, %v238
        %v998 = vmul.f32 %v962, %v238
        %v999 = vmul.f32 %v965, %v238
        %v1000 = vmul.f32 %v968, %v238
        %v1001 = vmul.f32 %v971, %v238
        %v1002 = vmul.f32 %v974, %v238
        %v1003 = vmul.f32 %v977, %v238
        %v1004 = vmul.f32 %v980, %v238
        %v1005 = vmul.f32 %v983, %v238
        %v1006 = vmul.f32 %v986, %v238
        %v1007 = vmul.f32 %v989, %v238
        %v1008 = vmul.f32 %v992, %v238
        %v1009 = vadd.f32 %v993, 1e-05
        %v1010 = vadd.f32 %v994, 1e-05
        %v1011 = vadd.f32 %v995, 1e-05
        %v1012 = vadd.f32 %v996, 1e-05
        %v1013 = vadd.f32 %v997, 1e-05
        %v1014 = vadd.f32 %v998, 1e-05
        %v1015 = vadd.f32 %v999, 1e-05
        %v1016 = vadd.f32 %v1000, 1e-05
        %v1017 = vadd.f32 %v1001, 1e-05
        %v1018 = vadd.f32 %v1002, 1e-05
        %v1019 = vadd.f32 %v1003, 1e-05
        %v1020 = vadd.f32 %v1004, 1e-05
        %v1021 = vadd.f32 %v1005, 1e-05
        %v1022 = vadd.f32 %v1006, 1e-05
        %v1023 = vadd.f32 %v1007, 1e-05
        %v1024 = vadd.f32 %v1008, 1e-05
        %v1025 = vrsqrt.pop %v1009
        %v1026 = vrsqrt.pop %v1010
        %v1027 = vrsqrt.pop %v1011
        %v1028 = vrsqrt.pop %v1012
        %v1029 = vrsqrt.pop %v1013
        %v1030 = vrsqrt.pop %v1014
        %v1031 = vrsqrt.pop %v1015
        %v1032 = vrsqrt.pop %v1016
        %v1033 = vrsqrt.pop %v1017
        %v1034 = vrsqrt.pop %v1018
        %v1035 = vrsqrt.pop %v1019
        %v1036 = vrsqrt.pop %v1020
        %v1037 = vrsqrt.pop %v1021
        %v1038 = vrsqrt.pop %v1022
        %v1039 = vrsqrt.pop %v1023
        %v1040 = vrsqrt.pop %v1024
        %v1041 = vmul.f32 %v913, %v1025
        %v1042 = vmul.f32 %v914, %v1026
        %v1043 = vmul.f32 %v915, %v1027
        %v1044 = vmul.f32 %v916, %v1028
        %v1045 = vmul.f32 %v917, %v1029
        %v1046 = vmul.f32 %v918, %v1030
        %v1047 = vmul.f32 %v919, %v1031
        %v1048 = vmul.f32 %v920, %v1032
        %v1049 = vmul.f32 %v921, %v1033
        %v1050 = vmul.f32 %v922, %v1034
        %v1051 = vmul.f32 %v923, %v1035
        %v1052 = vmul.f32 %v924, %v1036
        %v1053 = vmul.f32 %v925, %v1037
        %v1054 = vmul.f32 %v926, %v1038
        %v1055 = vmul.f32 %v927, %v1039
        %v1056 = vmul.f32 %v928, %v1040
        %v1057 = vlaneseq
        %v1058 = vshrl.u32 %v1057, 7
        %v1059 = vsub.s32 4, %v1058
        %v1060 = vrot.slane %v284, %v1059
        %v1061 = vmul.f32 %v1041, %v1060
        %v1062 = vmul.f32 %v1042, %v1060
        %v1063 = vmul.f32 %v1043, %v1060
        %v1064 = vmul.f32 %v1044, %v1060
        %v1065 = vmul.f32 %v1045, %v1060
        %v1066 = vmul.f32 %v1046, %v1060
        %v1067 = vmul.f32 %v1047, %v1060
        %v1068 = vmul.f32 %v1048, %v1060
        %v1069 = vmul.f32 %v1049, %v1060
        %v1070 = vmul.f32 %v1050, %v1060
        %v1071 = vmul.f32 %v1051, %v1060
        %v1072 = vmul.f32 %v1052, %v1060
        %v1073 = vmul.f32 %v1053, %v1060
        %v1074 = vmul.f32 %v1054, %v1060
        %v1075 = vmul.f32 %v1055, %v1060
        %v1076 = vmul.f32 %v1056, %v1060
        %v1077 = vlaneseq
        %v1078 = vshrl.u32 %v1077, 7
        %v1079 = vsub.s32 5, %v1078
        %v1080 = vrot.slane %v284, %v1079
        %v1081 = vadd.f32 %v1061, %v1080
        %v1082 = vadd.f32 %v1062, %v1080
        %v1083 = vadd.f32 %v1063, %v1080
        %v1084 = vadd.f32 %v1064, %v1080
        %v1085 = vadd.f32 %v1065, %v1080
        %v1086 = vadd.f32 %v1066, %v1080
        %v1087 = vadd.f32 %v1067, %v1080
        %v1088 = vadd.f32 %v1068, %v1080
        %v1089 = vadd.f32 %v1069, %v1080
        %v1090 = vadd.f32 %v1070, %v1080
        %v1091 = vadd.f32 %v1071, %v1080
        %v1092 = vadd.f32 %v1072, %v1080
        %v1093 = vadd.f32 %v1073, %v1080
        %v1094 = vadd.f32 %v1074, %v1080
        %v1095 = vadd.f32 %v1075, %v1080
        %v1096 = vadd.f32 %v1076, %v1080
        %v1097 = vmax.f32 %v1081, 0.0
        %v1098 = vmax.f32 %v1082, 0.0
        %v1099 = vmax.f32 %v1083, 0.0
        %v1100 = vmax.f32 %v1084, 0.0
        %v1101 = vmax.f32 %v1085, 0.0
        %v1102 = vmax.f32 %v1086, 0.0
        %v1103 = vmax.f32 %v1087, 0.0
        %v1104 = vmax.f32 %v1088, 0.0
        %v1105 = vmax.f32 %v1089, 0.0
        %v1106 = vmax.f32 %v1090, 0.0
        %v1107 = vmax.f32 %v1091, 0.0
        %v1108 = vmax.f32 %v1092, 0.0
        %v1109 = vmax.f32 %v1093, 0.0
        %v1110 = vmax.f32 %v1094, 0.0
        %v1111 = vmax.f32 %v1095, 0.0
        %v1112 = vmax.f32 %v1096, 0.0
        %v1113 = vpack.c.bf16 %v1098, %v1097
        %v1114 = vpack.c.bf16 %v1100, %v1099
        %v1115 = vpack.c.bf16 %v1102, %v1101
        %v1116 = vpack.c.bf16 %v1104, %v1103
        %v1117 = vpack.c.bf16 %v1106, %v1105
        %v1118 = vpack.c.bf16 %v1108, %v1107
        %v1119 = vpack.c.bf16 %v1110, %v1109
        %v1120 = vpack.c.bf16 %v1112, %v1111
        %v1121 = vlaneseq
        %v1122 = vshrl.u32 %v1121, 7
        %v1123 = vsub.s32 6, %v1122
        %v1124 = vrot.slane %v284, %v1123
        %v1129 = vunpack.c.l.b16 %v280
        %v1130 = vunpack.c.l.b16 %v281
        %v1131 = vunpack.c.l.b16 %v282
        %v1132 = vunpack.c.l.b16 %v283
        %v1133 = vpack.c.b16 %v1130, %v1129
        %v1134 = vpack.c.b16 %v1132, %v1131
        %v1138 = vsel %vm189, %v1113, 0
        %v1141 = vsel %vm189, %v1114, 0
        %v1144 = vsel %vm189, %v1115, 0
        %v1147 = vsel %vm189, %v1116, 0
        %v1150 = vsel %vm189, %v1117, 0
        %v1153 = vsel %vm189, %v1118, 0
        %v1156 = vsel %vm189, %v1119, 0
        %v1159 = vsel %vm189, %v1120, 0
        %1161 = vmatprep.subr.bf16.mxu0 0
        %1162 = vmatpush1.bf16.msra.mxu0 %v1133
        %1163 = vmatprep.subr.bf16.mxu0 0
        %1164 = vmatpush1.bf16.msra.mxu0 %v1134
        %1165 = vmatprep.subr.bf16.mxu0 0
        %1166 = vmatpush1.bf16.msra.mxu0 0
        %1167 = vmatprep.subr.bf16.mxu0 0
        %1168 = vmatpush1.bf16.msra.mxu0 0
        %1169 = vmatprep.subr.bf16.mxu0 0
        %1170 = vmatpush1.bf16.msra.mxu0 0
        %1171 = vmatprep.subr.bf16.mxu0 0
        %1172 = vmatpush1.bf16.msra.mxu0 0
        %1173 = vmatprep.subr.bf16.mxu0 0
        %1174 = vmatpush1.bf16.msra.mxu0 0
        %1175 = vmatprep.subr.bf16.mxu0 0
        %1176 = vmatpush1.bf16.msra.mxu0 0
        %1177 = vmatprep.subr.bf16.mxu0 0
        %1178 = vmatpush1.bf16.msra.mxu0 0
        %1179 = vmatprep.subr.bf16.mxu0 0
        %1180 = vmatpush1.bf16.msra.mxu0 0
        %1181 = vmatprep.subr.bf16.mxu0 0
        %1182 = vmatpush1.bf16.msra.mxu0 0
        %1183 = vmatprep.subr.bf16.mxu0 0
        %1184 = vmatpush1.bf16.msra.mxu0 0
        %1185 = vmatprep.subr.bf16.mxu0 0
        %1186 = vmatpush1.bf16.msra.mxu0 0
        %1187 = vmatprep.subr.bf16.mxu0 0
        %1188 = vmatpush1.bf16.msra.mxu0 0
        %1189 = vmatprep.subr.bf16.mxu0 0
        %1190 = vmatpush1.bf16.msra.mxu0 0
        %1191 = vmatprep.subr.bf16.mxu0 0
        %1192 = vmatpush1.bf16.msra.mxu0 0
        %1193 = vmatprep.mubr.bf16.mxu0 0
        %1194 = vmatmul.mubr.bf16.gmra.mrb[0].mxu0 %v1138
        %v1195 = vpop.f32.mrb[0].mxu0
        %v1196 = vadd.f32 %v1124, %v1195
        %v1197 = vpop.f32.mrb[0].mxu0
        %v1198 = vpop.f32.mrb[0].mxu0
        %v1199 = vadd.f32 %v1124, %v1198
        %v1200 = vpop.f32.mrb[0].mxu0
        %1201 = vmatprep.mubr.bf16.mxu0 0
        %1202 = vmatmul.mubr.bf16.gmra.mrb[0].mxu0 %v1141
        %v1203 = vpop.f32.mrb[0].mxu0
        %v1204 = vadd.f32 %v1124, %v1203
        %v1205 = vpop.f32.mrb[0].mxu0
        %v1206 = vpop.f32.mrb[0].mxu0
        %v1207 = vadd.f32 %v1124, %v1206
        %v1208 = vpop.f32.mrb[0].mxu0
        %1209 = vmatprep.mubr.bf16.mxu0 0
        %1210 = vmatmul.mubr.bf16.gmra.mrb[0].mxu0 %v1144
        %v1211 = vpop.f32.mrb[0].mxu0
        %v1212 = vadd.f32 %v1124, %v1211
        %v1213 = vpop.f32.mrb[0].mxu0
        %v1214 = vpop.f32.mrb[0].mxu0
        %v1215 = vadd.f32 %v1124, %v1214
        %v1216 = vpop.f32.mrb[0].mxu0
        %1217 = vmatprep.mubr.bf16.mxu0 0
        %1218 = vmatmul.mubr.bf16.gmra.mrb[0].mxu0 %v1147
        %v1219 = vpop.f32.mrb[0].mxu0
        %v1220 = vadd.f32 %v1124, %v1219
        %v1221 = vpop.f32.mrb[0].mxu0
        %v1222 = vpop.f32.mrb[0].mxu0
        %v1223 = vadd.f32 %v1124, %v1222
        %v1224 = vpop.f32.mrb[0].mxu0
        %1225 = vmatprep.mubr.bf16.mxu0 0
        %1226 = vmatmul.mubr.bf16.gmra.mrb[0].mxu0 %v1150
        %v1227 = vpop.f32.mrb[0].mxu0
        %v1228 = vadd.f32 %v1124, %v1227
        %v1229 = vpop.f32.mrb[0].mxu0
        %v1230 = vpop.f32.mrb[0].mxu0
        %v1231 = vadd.f32 %v1124, %v1230
        %v1232 = vpop.f32.mrb[0].mxu0
        %1233 = vmatprep.mubr.bf16.mxu0 0
        %1234 = vmatmul.mubr.bf16.gmra.mrb[0].mxu0 %v1153
        %v1235 = vpop.f32.mrb[0].mxu0
        %v1236 = vadd.f32 %v1124, %v1235
        %v1237 = vpop.f32.mrb[0].mxu0
        %v1238 = vpop.f32.mrb[0].mxu0
        %v1239 = vadd.f32 %v1124, %v1238
        %v1240 = vpop.f32.mrb[0].mxu0
        %1241 = vmatprep.mubr.bf16.mxu0 0
        %1242 = vmatmul.mubr.bf16.gmra.mrb[0].mxu0 %v1156
        %v1243 = vpop.f32.mrb[0].mxu0
        %v1244 = vadd.f32 %v1124, %v1243
        %v1245 = vpop.f32.mrb[0].mxu0
        %v1246 = vpop.f32.mrb[0].mxu0
        %v1247 = vadd.f32 %v1124, %v1246
        %v1248 = vpop.f32.mrb[0].mxu0
        %1249 = vmatprep.mubr.bf16.mxu0 0
        %1250 = vmatmul.mubr.bf16.gmra.mrb[0].mxu0 %v1159
        %v1251 = vpop.f32.mrb[0].mxu0
        %v1252 = vadd.f32 %v1124, %v1251
        %v1253 = vpop.f32.mrb[0].mxu0
        %v1254 = vpop.f32.mrb[0].mxu0
        %v1255 = vadd.f32 %v1124, %v1254
        %v1256 = vpop.f32.mrb[0].mxu0
        %1257 = vdwg.mxu0
        %v1258 = vmul.f32 %v1196, %v1196
        %v1259 = vmul.f32 %v1199, %v1199
        %v1260 = vmul.f32 %v1204, %v1204
        %v1261 = vmul.f32 %v1207, %v1207
        %v1262 = vmul.f32 %v1212, %v1212
        %v1263 = vmul.f32 %v1215, %v1215
        %v1264 = vmul.f32 %v1220, %v1220
        %v1265 = vmul.f32 %v1223, %v1223
        %v1266 = vmul.f32 %v1228, %v1228
        %v1267 = vmul.f32 %v1231, %v1231
        %v1268 = vmul.f32 %v1236, %v1236
        %v1269 = vmul.f32 %v1239, %v1239
        %v1270 = vmul.f32 %v1244, %v1244
        %v1271 = vmul.f32 %v1247, %v1247
        %v1272 = vmul.f32 %v1252, %v1252
        %v1273 = vmul.f32 %v1255, %v1255
        %vm1274 = vcmask 64512
        %v1275 = vsel %vm1274, %v1258, 0.0
        %1276 = vadd.xlane.f32.xlu0 %v1275
        %v1277 = vpop.xlane.xlu0 %1276
        %v1278 = vsel %vm1274, %v1259, 0.0
        %1279 = vadd.xlane.f32.xlu0 %v1278
        %v1280 = vpop.xlane.xlu0 %1279
        %v1281 = vsel %vm1274, %v1260, 0.0
        %1282 = vadd.xlane.f32.xlu0 %v1281
        %v1283 = vpop.xlane.xlu0 %1282
        %v1284 = vsel %vm1274, %v1261, 0.0
        %1285 = vadd.xlane.f32.xlu0 %v1284
        %v1286 = vpop.xlane.xlu0 %1285
        %v1287 = vsel %vm1274, %v1262, 0.0
        %1288 = vadd.xlane.f32.xlu0 %v1287
        %v1289 = vpop.xlane.xlu0 %1288
        %v1290 = vsel %vm1274, %v1263, 0.0
        %1291 = vadd.xlane.f32.xlu0 %v1290
        %v1292 = vpop.xlane.xlu0 %1291
        %v1293 = vsel %vm1274, %v1264, 0.0
        %1294 = vadd.xlane.f32.xlu0 %v1293
        %v1295 = vpop.xlane.xlu0 %1294
        %v1296 = vsel %vm1274, %v1265, 0.0
        %1297 = vadd.xlane.f32.xlu0 %v1296
        %v1298 = vpop.xlane.xlu0 %1297
        %v1299 = vsel %vm1274, %v1266, 0.0
        %1300 = vadd.xlane.f32.xlu0 %v1299
        %v1301 = vpop.xlane.xlu0 %1300
        %v1302 = vsel %vm1274, %v1267, 0.0
        %1303 = vadd.xlane.f32.xlu0 %v1302
        %v1304 = vpop.xlane.xlu0 %1303
        %v1305 = vsel %vm1274, %v1268, 0.0
        %1306 = vadd.xlane.f32.xlu0 %v1305
        %v1307 = vpop.xlane.xlu0 %1306
        %v1308 = vsel %vm1274, %v1269, 0.0
        %1309 = vadd.xlane.f32.xlu0 %v1308
        %v1310 = vpop.xlane.xlu0 %1309
        %v1311 = vsel %vm1274, %v1270, 0.0
        %1312 = vadd.xlane.f32.xlu0 %v1311
        %v1313 = vpop.xlane.xlu0 %1312
        %v1314 = vsel %vm1274, %v1271, 0.0
        %1315 = vadd.xlane.f32.xlu0 %v1314
        %v1316 = vpop.xlane.xlu0 %1315
        %v1317 = vsel %vm1274, %v1272, 0.0
        %1318 = vadd.xlane.f32.xlu0 %v1317
        %v1319 = vpop.xlane.xlu0 %1318
        %v1320 = vsel %vm1274, %v1273, 0.0
        %1321 = vadd.xlane.f32.xlu0 %v1320
        %v1322 = vpop.xlane.xlu0 %1321
        %v1323 = vmax.f32 %v1277, 1e-24
        %v1324 = vmax.f32 %v1280, 1e-24
        %v1325 = vmax.f32 %v1283, 1e-24
        %v1326 = vmax.f32 %v1286, 1e-24
        %v1327 = vmax.f32 %v1289, 1e-24
        %v1328 = vmax.f32 %v1292, 1e-24
        %v1329 = vmax.f32 %v1295, 1e-24
        %v1330 = vmax.f32 %v1298, 1e-24
        %v1331 = vmax.f32 %v1301, 1e-24
        %v1332 = vmax.f32 %v1304, 1e-24
        %v1333 = vmax.f32 %v1307, 1e-24
        %v1334 = vmax.f32 %v1310, 1e-24
        %v1335 = vmax.f32 %v1313, 1e-24
        %v1336 = vmax.f32 %v1316, 1e-24
        %v1337 = vmax.f32 %v1319, 1e-24
        %v1338 = vmax.f32 %v1322, 1e-24
        %v1339 = vrsqrt.pop %v1323
        %v1340 = vrsqrt.pop %v1324
        %v1341 = vrsqrt.pop %v1325
        %v1342 = vrsqrt.pop %v1326
        %v1343 = vrsqrt.pop %v1327
        %v1344 = vrsqrt.pop %v1328
        %v1345 = vrsqrt.pop %v1329
        %v1346 = vrsqrt.pop %v1330
        %v1347 = vrsqrt.pop %v1331
        %v1348 = vrsqrt.pop %v1332
        %v1349 = vrsqrt.pop %v1333
        %v1350 = vrsqrt.pop %v1334
        %v1351 = vrsqrt.pop %v1335
        %v1352 = vrsqrt.pop %v1336
        %v1353 = vrsqrt.pop %v1337
        %v1354 = vrsqrt.pop %v1338
        %v1355 = vmul.f32 %v1196, %v1339
        %v1356 = vmul.f32 %v1199, %v1340
        %v1357 = vmul.f32 %v1204, %v1341
        %v1358 = vmul.f32 %v1207, %v1342
        %v1359 = vmul.f32 %v1212, %v1343
        %v1360 = vmul.f32 %v1215, %v1344
        %v1361 = vmul.f32 %v1220, %v1345
        %v1362 = vmul.f32 %v1223, %v1346
        %v1363 = vmul.f32 %v1228, %v1347
        %v1364 = vmul.f32 %v1231, %v1348
        %v1365 = vmul.f32 %v1236, %v1349
        %v1366 = vmul.f32 %v1239, %v1350
        %v1367 = vmul.f32 %v1244, %v1351
        %v1368 = vmul.f32 %v1247, %v1352
        %v1369 = vmul.f32 %v1252, %v1353
        %v1370 = vmul.f32 %v1255, %v1354
        %v1371 = vsel %vm1274, %v1355, 0.0
        %v1372 = vsel %vm1274, %v1356, 0.0
        %v1373 = vsel %vm1274, %v1357, 0.0
        %v1374 = vsel %vm1274, %v1358, 0.0
        %v1375 = vsel %vm1274, %v1359, 0.0
        %v1376 = vsel %vm1274, %v1360, 0.0
        %v1377 = vsel %vm1274, %v1361, 0.0
        %v1378 = vsel %vm1274, %v1362, 0.0
        %v1379 = vsel %vm1274, %v1363, 0.0
        %v1380 = vsel %vm1274, %v1364, 0.0
        %v1381 = vsel %vm1274, %v1365, 0.0
        %v1382 = vsel %vm1274, %v1366, 0.0
        %v1383 = vsel %vm1274, %v1367, 0.0
        %v1384 = vsel %vm1274, %v1368, 0.0
        %v1385 = vsel %vm1274, %v1369, 0.0
        %v1386 = vsel %vm1274, %v1370, 0.0
        %1387 = vst [vmem:[%s164] sm:$0xff] %v1371
        %1388 = vst [vmem:[%s164 + $0x8] sm:$0xff] %v1372
        %1389 = vst [vmem:[%s164 + $0x10] sm:$0xff] %v1373
        %1390 = vst [vmem:[%s164 + $0x18] sm:$0xff] %v1374
        %1391 = vst [vmem:[%s164 + $0x20] sm:$0xff] %v1375
        %1392 = vst [vmem:[%s164 + $0x28] sm:$0xff] %v1376
        %1393 = vst [vmem:[%s164 + $0x30] sm:$0xff] %v1377
        %1394 = vst [vmem:[%s164 + $0x38] sm:$0xff] %v1378
        %1395 = vst [vmem:[%s164 + $0x40] sm:$0xff] %v1379
        %1396 = vst [vmem:[%s164 + $0x48] sm:$0xff] %v1380
        %1397 = vst [vmem:[%s164 + $0x50] sm:$0xff] %v1381
        %1398 = vst [vmem:[%s164 + $0x58] sm:$0xff] %v1382
        %1399 = vst [vmem:[%s164 + $0x60] sm:$0xff] %v1383
        %1400 = vst [vmem:[%s164 + $0x68] sm:$0xff] %v1384
        %1401 = vst [vmem:[%s164 + $0x70] sm:$0xff] %v1385
        %1402 = vst [vmem:[%s164 + $0x78] sm:$0xff] %v1386
        %s1403 = sand.u32 %s93, 1
        %s1404 = scalar_lea.sflag [#allocation3], %s1403
        %s1405 = sand.u32 %s93, 1
        %s1406 = smul.addr %s1405, 128
        %s1407 = scalar_lea.vmem [#allocation2], %s1406
        // Predicated region
        $region33: #{tpu_custom_call.1} parent=31 // pred_check
          %p1408 = pneg %p103
        $region34: #{tpu_custom_call.1} parent=31 // pred_check_branch
          %1410 = sbr.rel (%p1408) target = $region36
        $region35: #{tpu_custom_call.1} parent=31 // pred_region
          %s1411 = smul.u32 16, %s17
          %s1413 = ssub.s32 2048, 2048
          %1414 = vsyncadd %s1404, %s1413
          %s1415 = smul.addr %s1411, 128
          %s1416 = scalar_lea.hbm %s3, %s1415
          %s1417 = sshll.u32 %s1407, 4
          %s1418 = int_to_ptr.vmem [resolvable:$true] %s1417
          %1423 = dma.vmem_to_hbm [thread:$0]  %s1418, 2048, %s1416, %s1404, 128, 128, 8
        $region36: #{tpu_custom_call.1} parent=31 // pred_fallthru
          _
      $region32: #{tpu_custom_call.1} parent=5 // pred_fallthru
        _
      %p1424 = scmp.le.s32.totalorder 2, %s12
      // Predicated region
      $region37: #{tpu_custom_call.1} parent=5 // pred_check
        %p1425 = pneg %p1424
      $region38: #{tpu_custom_call.1} parent=5 // pred_check_branch
        %1427 = sbr.rel (%p1425) target = $region40
      $region39: #{tpu_custom_call.1} parent=5 // pred_region
        %s1428 = ssub.s32 %s12, 2
        // Predicated region
        $region41: #{tpu_custom_call.1} parent=39 // pred_check
          %p1429 = pneg %p109
        $region42: #{tpu_custom_call.1} parent=39 // pred_check_branch
          %1431 = sbr.rel (%p1429) target = $region44
        $region43: #{tpu_custom_call.1} parent=39 // pred_region
          %s1432 = sand.u32 %s94, 1
          %s1433 = scalar_lea.sflag [#allocation3], %s1432
          %s1434 = sand.u32 %s94, 1
          %s1435 = smul.addr %s1434, 128
          %s1436 = scalar_lea.vmem [#allocation2], %s1435
          %1437 = dma.done %s1433, 2048
        $region44: #{tpu_custom_call.1} parent=39 // pred_fallthru
          _
      $region40: #{tpu_custom_call.1} parent=5 // pred_fallthru
        _
    $region6: #{tpu_custom_call.1} parent=1 // loop_footer
      %s16 = sadd.s32 1, %s12
    $region7: #{tpu_custom_call.1} parent=1 // loop_footer_branch
      %11 = sbr.rel target = $region3
    $region8: #{tpu_custom_call.1} parent=1 // loop_exit
      _
    %1438 = vsyncpa [#allocation3], 1
    %s1439 = scalar_lea.sflag [#allocation3], 1
    %1440 = vsyncpa %s1439, 1

</llo_original>
